<compile_context>
chip_gen: v5e
topology: v5e:2x2
jax: 0.10.0
libtpu: 0.0.40
codegen_flags: <defaults>
</compile_context>

<pallas_src>
import functools

import jax
import jax.numpy as jnp
from jax.experimental import pallas as pl
from jax.experimental.pallas import tpu as pltpu


# -----------------------------------------------------------------------------
# Fused CFNEncoderLayer (conv-only, mode1) kernel: one (tt, D) time tile per step
# -----------------------------------------------------------------------------
def _cfn_layer_kernel(xc_ref, xl_ref, xr_ref,
                      w1v_ref, b1v_ref, w1g_ref, b1g_ref,
                      dw_ref, db_ref, w2_ref, b2_ref,
                      o_ref, a_buf,
                      *, tt, hp, pad, ksize, inner, t_valid, t_padded):
    t = pl.program_id(1)

    w1v = w1v_ref[...]
    w1g = w1g_ref[...]
    b1v = b1v_ref[...].astype(jnp.float32)
    b1g = b1g_ref[...].astype(jnp.float32)

    def glu(xblk):
        # Two lane-aligned (D -> inner) MXU matmuls (value / gate halves of the
        # torch GLU, dim=1).  Inputs keep their native dtype (bf16 feeds the MXU
        # directly); accumulation is f32.
        v = jnp.dot(xblk, w1v, preferred_element_type=jnp.float32) + b1v
        g = jnp.dot(xblk, w1g, preferred_element_type=jnp.float32) + b1g
        return v * jax.nn.sigmoid(g)

    # ---- GLU branch for the core tile and its two halos, staged in a VMEM
    #      scratch so the depthwise taps below are plain row-offset loads.
    xc = xc_ref[0]                                                   # (tt, D)
    a_core = glu(xc)                                                 # (tt, I) f32
    if t_padded != t_valid:
        rows = t * tt + jax.lax.broadcasted_iota(jnp.int32, (tt, 1), 0)
        a_core = jnp.where(rows < t_valid, a_core, 0.0)              # padded tail -> 0
    a_buf[hp:hp + tt, :] = a_core

    # Left halo: rows [t*tt - hp, t*tt); all out-of-range iff t == 0.
    left_keep = (t > 0).astype(jnp.float32)
    a_buf[0:hp, :] = glu(xl_ref[0]) * left_keep

    # Right halo: rows [(t+1)*tt, (t+1)*tt + hp); zero where row >= t_valid.
    rrows = (t + 1) * tt + jax.lax.broadcasted_iota(jnp.int32, (hp, 1), 0)
    a_buf[hp + tt:2 * hp + tt, :] = jnp.where(rrows < t_valid, glu(xr_ref[0]), 0.0)

    # ---- depthwise Conv1d(kernel=K, groups=inner), "same" zero padding.
    #      K shifted FMAs over the scratch; 4 accumulator chains keep the
    #      VPU's 4 VALU slots busy instead of one serial dependency chain.
    accs = [jnp.zeros((tt, inner), jnp.float32) for _ in range(4)]
    base = hp - pad
    for k in range(ksize):  # static unroll, K is small (e.g. 31)
        tap = a_buf[pl.ds(base + k, tt), :]                          # (tt, I) vld
        wrow = dw_ref[k:k + 1, :].astype(jnp.float32)                # (1, I)
        accs[k % 4] = accs[k % 4] + tap * wrow
    acc = (accs[0] + accs[1]) + (accs[2] + accs[3])
    acc = acc + db_ref[...].astype(jnp.float32)

    # ---- SiLU, pointwise Conv1d(inner -> dim), fused residual.
    a2 = acc * jax.nn.sigmoid(acc)
    y = jnp.dot(a2.astype(w2_ref.dtype), w2_ref[...],
                preferred_element_type=jnp.float32)
    y = y + b2_ref[...].astype(jnp.float32)
    o_ref[0] = (xc.astype(jnp.float32) + y).astype(o_ref.dtype)


# -----------------------------------------------------------------------------
# Wrapper: tiling choice + pallas_call
# -----------------------------------------------------------------------------
def _vmem_bytes_estimate(tt, hp, d, inner, ksize, act_itemsize, w_itemsize):
    blocks = 2 * (2 * tt * d + 2 * hp * d) * act_itemsize        # dbl-buffered x/out + halos
    weights = 2 * (2 * d * inner + inner * d + ksize * inner + 3 * inner + d) * w_itemsize
    scratch = 4 * (2 * hp + tt) * inner
    temps = 10 * 4 * tt * inner                                  # GLU halves / acc chains (f32)
    return blocks + weights + scratch + temps


def _choose_t_tile(T, hp, d, inner, ksize, act_itemsize, w_itemsize,
                   budget_bytes=20 * 1024 * 1024):
    tt = hp * ((T + hp - 1) // hp)           # single tile, rounded up to halo unit
    while tt > hp and _vmem_bytes_estimate(tt, hp, d, inner, ksize,
                                           act_itemsize, w_itemsize) > budget_bytes:
        tt = hp * max(1, (tt // hp) // 2)
    return tt


def cfn_conv_layer(x, params, *, t_tile=None, vmem_limit_bytes=48 * 1024 * 1024):
    """One CFNEncoderLayer forward (x + ConformerConvModule(x)) as a fused kernel."""
    B, T, D = x.shape
    w1v, b1v, w1g, b1g, dw, db, w2, b2 = (
        params[k] for k in ("w1v", "b1v", "w1g", "b1g", "dw", "db", "w2", "b2"))
    inner = w1v.shape[1]
    K = dw.shape[0]
    assert K % 2 == 1, "same-padding residual path assumes odd kernel"
    pad = K // 2
    hp = max(8, 8 * ((pad + 7) // 8))        # halo rows: >= pad, multiple of 8

    act_itemsize = jnp.dtype(x.dtype).itemsize
    w_itemsize = jnp.dtype(w1v.dtype).itemsize
    if t_tile is None:
        tt = _choose_t_tile(T, hp, D, inner, K, act_itemsize, w_itemsize)
    else:
        assert t_tile % hp == 0 and t_tile >= hp, f"t_tile must be a multiple of {hp}"
        tt = t_tile
    n_t = (T + tt - 1) // tt
    t_pad = n_t * tt

    x_in = x if t_pad == T else jnp.pad(x, ((0, 0), (0, t_pad - T), (0, 0)))

    r = tt // hp                             # halo blocks per time tile
    n_hblk = t_pad // hp                     # total halo-sized blocks along T

    kernel = functools.partial(_cfn_layer_kernel, tt=tt, hp=hp, pad=pad,
                               ksize=K, inner=inner, t_valid=T, t_padded=t_pad)

    w_bytes = sum(int(a.size) * jnp.dtype(a.dtype).itemsize
                  for a in (w1v, b1v, w1g, b1g, dw, db, w2, b2))
    cost = pl.CostEstimate(
        flops=int(B * t_pad * inner * (6 * D + 2 * K + 8)),
        transcendentals=int(2 * B * t_pad * inner),
        bytes_accessed=int(act_itemsize * B * t_pad * D * 2
                           + act_itemsize * B * n_t * 2 * hp * D
                           + w_bytes),
    )

    out = pl.pallas_call(
        kernel,
        out_shape=jax.ShapeDtypeStruct((B, t_pad, D), x.dtype),
        grid=(B, n_t),
        in_specs=[
            # core activation tile
            pl.BlockSpec((1, tt, D), lambda b, t: (b, t, 0)),
            # left halo: hp rows ending at the tile start (clamped; masked at t==0)
            pl.BlockSpec((1, hp, D),
                         lambda b, t: (b, jnp.maximum(t * r - 1, 0), 0)),
            # right halo: hp rows starting at the tile end (clamped; masked by row index)
            pl.BlockSpec((1, hp, D),
                         lambda b, t: (b, jnp.minimum((t + 1) * r, n_hblk - 1), 0)),
            # weights / biases (constant index maps)
            pl.BlockSpec((D, inner), lambda b, t: (0, 0)),   # w1 value half
            pl.BlockSpec((1, inner), lambda b, t: (0, 0)),   # b1 value half
            pl.BlockSpec((D, inner), lambda b, t: (0, 0)),   # w1 gate half
            pl.BlockSpec((1, inner), lambda b, t: (0, 0)),   # b1 gate half
            pl.BlockSpec((K, inner), lambda b, t: (0, 0)),   # depthwise weights
            pl.BlockSpec((1, inner), lambda b, t: (0, 0)),   # depthwise bias
            pl.BlockSpec((inner, D), lambda b, t: (0, 0)),   # w2
            pl.BlockSpec((1, D), lambda b, t: (0, 0)),       # b2
        ],
        out_specs=pl.BlockSpec((1, tt, D), lambda b, t: (b, t, 0)),
        scratch_shapes=[pltpu.VMEM((2 * hp + tt, inner), jnp.float32)],
        compiler_params=pltpu.CompilerParams(
            dimension_semantics=("parallel", "parallel"),
            vmem_limit_bytes=int(vmem_limit_bytes),
        ),
        cost_estimate=cost,
    )(x_in, x_in, x_in, w1v, b1v, w1g, b1g, dw, db, w2, b2)

    return out if t_pad == T else out[:, :T, :]


# -----------------------------------------------------------------------------
# Parameter init + module wrapper
# -----------------------------------------------------------------------------
def _init_layer_params(key, dim, expansion_factor, kernel_size, dtype):
    inner = dim * expansion_factor
    ks = jax.random.split(key, 8)
    s1 = 1.0 / dim ** 0.5
    return {
        # 1x1 Conv1d(dim -> 2*inner) split into the GLU value / gate halves.
        # torch nn.GLU(dim=1): first `inner` output channels = value, second = gate;
        # keep that column order when porting real torch checkpoints.
        "w1v": jax.random.normal(ks[0], (dim, inner), dtype) * s1,
        "b1v": jax.random.normal(ks[1], (1, inner), dtype) * 0.01,
        "w1g": jax.random.normal(ks[2], (dim, inner), dtype) * s1,
        "b1g": jax.random.normal(ks[3], (1, inner), dtype) * 0.01,
        # depthwise Conv1d(inner, inner, K, groups=inner): torch (I, 1, K) -> (K, I)
        "dw": jax.random.normal(ks[4], (kernel_size, inner), dtype) * (1.0 / kernel_size ** 0.5),
        "db": jax.random.normal(ks[5], (1, inner), dtype) * 0.01,
        # 1x1 Conv1d(inner -> dim): torch weight (D, I, 1) stored transposed (I, D)
        "w2": jax.random.normal(ks[6], (inner, dim), dtype) * (1.0 / inner ** 0.5),
        "b2": jax.random.normal(ks[7], (1, dim), dtype) * 0.01,
    }


class ConformerNaiveEncoder:
    """JAX/Pallas port of the PyTorch ConformerNaiveEncoder (conv-only, mode1)."""

    def __init__(self, num_layers, num_heads, dim_model, expansion_factor=2,
                 kernel_size=31, use_norm=False, conv_only=True, conv_dropout=0.0,
                 atten_dropout=0.1, conv_model_type="mode1",
                 conv_model_activation="SiLU", GLU_type="GLU",
                 *, key, dtype=jnp.float32):
        if not conv_only:
            # TODO(synk): attention branch (nn.TransformerEncoderLayer) not implemented.
            raise NotImplementedError("attention branch not implemented")
        if use_norm:
            # TODO(synk): LayerNorm pre-norm (use_norm=True) not implemented.
            raise NotImplementedError("use_norm=True not implemented")
        assert conv_model_type == "mode1" and conv_model_activation == "SiLU" \
            and GLU_type == "GLU", "only the default mode1/SiLU/GLU config is ported"
        assert kernel_size % 2 == 1, "same-padding residual path assumes odd kernel"
        # conv_dropout / residual dropout are identity at inference (rates are 0 here).
        self.num_layers = num_layers
        self.num_heads = num_heads
        self.dim_model = dim_model
        keys = jax.random.split(key, num_layers)
        self.layers = [
            _init_layer_params(keys[i], dim_model, expansion_factor, kernel_size, dtype)
            for i in range(num_layers)
        ]

    def __call__(self, x, mask=None, *, t_tile=None):
        for p in self.layers:
            x = cfn_conv_layer(x, p, t_tile=t_tile)
        return x


# -----------------------------------------------------------------------------
# Pure-JAX reference (same math, no Pallas) for verification
# -----------------------------------------------------------------------------
def _reference_layer(x, p):
    hi = jax.lax.Precision.HIGHEST
    v = jnp.einsum("btd,di->bti", x, p["w1v"], precision=hi) + p["b1v"][0]
    g = jnp.einsum("btd,di->bti", x, p["w1g"], precision=hi) + p["b1g"][0]
    a = v * jax.nn.sigmoid(g)
    K = p["dw"].shape[0]
    pad = K // 2
    T = x.shape[1]
    a_pad = jnp.pad(a, ((0, 0), (pad, pad), (0, 0)))
    acc = jnp.zeros_like(a)
    for k in range(K):
        acc = acc + a_pad[:, k:k + T, :] * p["dw"][k][None, None, :]
    acc = acc + p["db"][0]
    a2 = acc * jax.nn.sigmoid(acc)
    y = jnp.einsum("bti,id->btd", a2, p["w2"], precision=hi) + p["b2"][0]
    return x + y


if __name__ == "__main__":
    key = jax.random.PRNGKey(0)
    B, T, D = 2, 60, 32           # batch, seq length, dim_model
    num_layers, num_heads = 2, 8
    kx, kp = jax.random.split(key)

    x = jax.random.normal(kx, (B, T, D), dtype=jnp.float32)
    enc = ConformerNaiveEncoder(num_layers=num_layers, num_heads=num_heads,
                                dim_model=D, expansion_factor=2, kernel_size=31,
                                key=kp)

    # t_tile=32 forces two time tiles per batch element, exercising the halo
    # exchange between tiles and the padded-tail masking (T=60 -> T_pad=64).
    y = jax.block_until_ready(enc(x, t_tile=32))

    # Reference forward with the same weights.
    ref = x
    for p in enc.layers:
        ref = _reference_layer(ref, p)
    ref = jax.block_until_ready(ref)

    assert y.shape == (B, T, D), y.shape
    assert y.dtype == x.dtype
    max_err = float(jnp.max(jnp.abs(y - ref)))
    assert bool(jnp.allclose(y, ref, atol=2e-3, rtol=2e-3)), max_err

    print("KERNEL_OK")
</pallas_src>

<mosaic_0001>
module attributes {stable_mosaic.version = 11 : i64} {
  func.func @_cfn_layer_kernel(%arg0: i32, %arg1: i32, %arg2: memref<1x32x32xf32, #tpu.memory_space<vmem>>, %arg3: memref<1x16x32xf32, #tpu.memory_space<vmem>>, %arg4: memref<1x16x32xf32, #tpu.memory_space<vmem>>, %arg5: memref<32x64xf32, #tpu.memory_space<vmem>>, %arg6: memref<1x64xf32, #tpu.memory_space<vmem>>, %arg7: memref<32x64xf32, #tpu.memory_space<vmem>>, %arg8: memref<1x64xf32, #tpu.memory_space<vmem>>, %arg9: memref<31x64xf32, #tpu.memory_space<vmem>>, %arg10: memref<1x64xf32, #tpu.memory_space<vmem>>, %arg11: memref<64x32xf32, #tpu.memory_space<vmem>>, %arg12: memref<1x32xf32, #tpu.memory_space<vmem>>, %arg13: memref<1x32x32xf32, #tpu.memory_space<vmem>>, %arg14: memref<64x64xf32, #tpu.memory_space<vmem>>) attributes {dimension_semantics = [#tpu.dimension_semantics<parallel>, #tpu.dimension_semantics<parallel>], iteration_bounds = array<i64: 2, 2>, scalar_prefetch = 0 : i64, scratch_operands = 1 : i64, tpu.core_type = #tpu.core_type<tc>, window_params = [{transform_indices = @transform_0, window_bounds = array<i64: 1, 32, 32>}, {transform_indices = @transform_1, window_bounds = array<i64: 1, 16, 32>}, {transform_indices = @transform_2, window_bounds = array<i64: 1, 16, 32>}, {pipeline_mode = #tpu.pipeline_mode<synchronous>, transform_indices = @transform_3, window_bounds = array<i64: 32, 64>}, {pipeline_mode = #tpu.pipeline_mode<synchronous>, transform_indices = @transform_4, window_bounds = array<i64: 1, 64>}, {pipeline_mode = #tpu.pipeline_mode<synchronous>, transform_indices = @transform_5, window_bounds = array<i64: 32, 64>}, {pipeline_mode = #tpu.pipeline_mode<synchronous>, transform_indices = @transform_6, window_bounds = array<i64: 1, 64>}, {pipeline_mode = #tpu.pipeline_mode<synchronous>, transform_indices = @transform_7, window_bounds = array<i64: 31, 64>}, {pipeline_mode = #tpu.pipeline_mode<synchronous>, transform_indices = @transform_8, window_bounds = array<i64: 1, 64>}, {pipeline_mode = #tpu.pipeline_mode<synchronous>, transform_indices = @transform_9, window_bounds = array<i64: 64, 32>}, {pipeline_mode = #tpu.pipeline_mode<synchronous>, transform_indices = @transform_10, window_bounds = array<i64: 1, 32>}, {transform_indices = @transform_11, window_bounds = array<i64: 1, 32, 32>}]} {
    %c0 = arith.constant 0 : index
    %c0_0 = arith.constant 0 : index
    %0 = vector.load %arg5[%c0, %c0_0] : memref<32x64xf32, #tpu.memory_space<vmem>>, vector<32x64xf32>
    %c0_1 = arith.constant 0 : index
    %c0_2 = arith.constant 0 : index
    %1 = vector.load %arg7[%c0_1, %c0_2] : memref<32x64xf32, #tpu.memory_space<vmem>>, vector<32x64xf32>
    %c0_3 = arith.constant 0 : index
    %c0_4 = arith.constant 0 : index
    %2 = vector.load %arg6[%c0_3, %c0_4] : memref<1x64xf32, #tpu.memory_space<vmem>>, vector<1x64xf32>
    %c0_5 = arith.constant 0 : index
    %c0_6 = arith.constant 0 : index
    %3 = vector.load %arg8[%c0_5, %c0_6] : memref<1x64xf32, #tpu.memory_space<vmem>>, vector<1x64xf32>
    %c0_7 = arith.constant 0 : index
    %c0_8 = arith.constant 0 : index
    %c0_9 = arith.constant 0 : index
    %4 = vector.load %arg2[%c0_7, %c0_8, %c0_9] : memref<1x32x32xf32, #tpu.memory_space<vmem>>, vector<1x32x32xf32>
    %5 = vector.shape_cast %4 : vector<1x32x32xf32> to vector<32x32xf32>
    %cst = arith.constant dense<0.000000e+00> : vector<32x64xf32>
    %6 = tpu.matmul %5, %0, %cst {dimension_numbers = #tpu.dot_dimension_numbers<[1], [0], [0], [1], [0, 0, 1, 1], [], []>} : vector<32x32xf32>, vector<32x64xf32>, vector<32x64xf32> -> vector<32x64xf32>
    %7 = vector.broadcast %2 : vector<1x64xf32> to vector<32x64xf32>
    %8 = arith.addf %6, %7 : vector<32x64xf32>
    %cst_10 = arith.constant dense<0.000000e+00> : vector<32x64xf32>
    %9 = tpu.matmul %5, %1, %cst_10 {dimension_numbers = #tpu.dot_dimension_numbers<[1], [0], [0], [1], [0, 0, 1, 1], [], []>} : vector<32x32xf32>, vector<32x64xf32>, vector<32x64xf32> -> vector<32x64xf32>
    %10 = vector.broadcast %3 : vector<1x64xf32> to vector<32x64xf32>
    %11 = arith.addf %9, %10 : vector<32x64xf32>
    %12 = arith.negf %11 : vector<32x64xf32>
    %13 = math.exp %12 : vector<32x64xf32>
    %cst_11 = arith.constant 1.000000e+00 : f32
    %14 = vector.broadcast %cst_11 : f32 to vector<32x64xf32>
    %15 = arith.addf %14, %13 : vector<32x64xf32>
    %16 = arith.divf %14, %15 : vector<32x64xf32>
    %17 = arith.mulf %8, %16 : vector<32x64xf32>
    %c32_i32 = arith.constant 32 : i32
    %18 = arith.muli %arg1, %c32_i32 : i32
    %19 = tpu.iota {dimensions = array<i32: 0>} : vector<32x1xi32>
    %20 = vector.broadcast %18 : i32 to vector<32x1xi32>
    %21 = arith.addi %20, %19 : vector<32x1xi32>
    %c60_i32 = arith.constant 60 : i32
    %22 = vector.broadcast %c60_i32 : i32 to vector<32x1xi32>
    %23 = arith.cmpi slt, %21, %22 : vector<32x1xi32>
    %cst_12 = arith.constant 0.000000e+00 : f32
    %24 = vector.shape_cast %23 : vector<32x1xi1> to vector<32x1xi1>
    %25 = vector.broadcast %24 : vector<32x1xi1> to vector<32x64xi1>
    %26 = vector.broadcast %cst_12 : f32 to vector<32x64xf32>
    %27 = arith.select %25, %17, %26 : vector<32x64xi1>, vector<32x64xf32>
    %c16 = arith.constant 16 : index
    %c0_13 = arith.constant 0 : index
    %28 = vector.load %arg14[%c16, %c0_13] : memref<64x64xf32, #tpu.memory_space<vmem>>, vector<32x64xf32>
    tpu.vector_store %arg14[%c16, %c0_13], %27 {strides = array<i32>} : memref<64x64xf32, #tpu.memory_space<vmem>>, vector<32x64xf32>,
    %c0_i32 = arith.constant 0 : i32
    %29 = arith.cmpi sgt, %arg1, %c0_i32 : i32
    %30 = arith.extui %29 : i1 to i32
    %31 = arith.sitofp %30 : i32 to f32
    %c0_14 = arith.constant 0 : index
    %c0_15 = arith.constant 0 : index
    %c0_16 = arith.constant 0 : index
    %32 = vector.load %arg3[%c0_14, %c0_15, %c0_16] : memref<1x16x32xf32, #tpu.memory_space<vmem>>, vector<1x16x32xf32>
    %33 = vector.shape_cast %32 : vector<1x16x32xf32> to vector<16x32xf32>
    %cst_17 = arith.constant dense<0.000000e+00> : vector<16x64xf32>
    %34 = tpu.matmul %33, %0, %cst_17 {dimension_numbers = #tpu.dot_dimension_numbers<[1], [0], [0], [1], [0, 0, 1, 1], [], []>} : vector<16x32xf32>, vector<32x64xf32>, vector<16x64xf32> -> vector<16x64xf32>
    %35 = vector.broadcast %2 : vector<1x64xf32> to vector<16x64xf32>
    %36 = arith.addf %34, %35 : vector<16x64xf32>
    %cst_18 = arith.constant dense<0.000000e+00> : vector<16x64xf32>
    %37 = tpu.matmul %33, %1, %cst_18 {dimension_numbers = #tpu.dot_dimension_numbers<[1], [0], [0], [1], [0, 0, 1, 1], [], []>} : vector<16x32xf32>, vector<32x64xf32>, vector<16x64xf32> -> vector<16x64xf32>
    %38 = vector.broadcast %3 : vector<1x64xf32> to vector<16x64xf32>
    %39 = arith.addf %37, %38 : vector<16x64xf32>
    %40 = arith.negf %39 : vector<16x64xf32>
    %41 = math.exp %40 : vector<16x64xf32>
    %cst_19 = arith.constant 1.000000e+00 : f32
    %42 = vector.broadcast %cst_19 : f32 to vector<16x64xf32>
    %43 = arith.addf %42, %41 : vector<16x64xf32>
    %44 = arith.divf %42, %43 : vector<16x64xf32>
    %45 = arith.mulf %36, %44 : vector<16x64xf32>
    %46 = vector.broadcast %31 : f32 to vector<16x64xf32>
    %47 = arith.mulf %45, %46 : vector<16x64xf32>
    %c0_20 = arith.constant 0 : index
    %c0_21 = arith.constant 0 : index
    %48 = vector.load %arg14[%c0_20, %c0_21] : memref<64x64xf32, #tpu.memory_space<vmem>>, vector<16x64xf32>
    tpu.vector_store %arg14[%c0_20, %c0_21], %47 {strides = array<i32>} : memref<64x64xf32, #tpu.memory_space<vmem>>, vector<16x64xf32>,
    %c1_i32 = arith.constant 1 : i32
    %49 = arith.addi %arg1, %c1_i32 : i32
    %c32_i32_22 = arith.constant 32 : i32
    %50 = arith.muli %49, %c32_i32_22 : i32
    %51 = tpu.iota {dimensions = array<i32: 0>} : vector<16x1xi32>
    %52 = vector.broadcast %50 : i32 to vector<16x1xi32>
    %53 = arith.addi %52, %51 : vector<16x1xi32>
    %c60_i32_23 = arith.constant 60 : i32
    %54 = vector.broadcast %c60_i32_23 : i32 to vector<16x1xi32>
    %55 = arith.cmpi slt, %53, %54 : vector<16x1xi32>
    %c0_24 = arith.constant 0 : index
    %c0_25 = arith.constant 0 : index
    %c0_26 = arith.constant 0 : index
    %56 = vector.load %arg4[%c0_24, %c0_25, %c0_26] : memref<1x16x32xf32, #tpu.memory_space<vmem>>, vector<1x16x32xf32>
    %57 = vector.shape_cast %56 : vector<1x16x32xf32> to vector<16x32xf32>
    %cst_27 = arith.constant dense<0.000000e+00> : vector<16x64xf32>
    %58 = tpu.matmul %57, %0, %cst_27 {dimension_numbers = #tpu.dot_dimension_numbers<[1], [0], [0], [1], [0, 0, 1, 1], [], []>} : vector<16x32xf32>, vector<32x64xf32>, vector<16x64xf32> -> vector<16x64xf32>
    %59 = vector.broadcast %2 : vector<1x64xf32> to vector<16x64xf32>
    %60 = arith.addf %58, %59 : vector<16x64xf32>
    %cst_28 = arith.constant dense<0.000000e+00> : vector<16x64xf32>
    %61 = tpu.matmul %57, %1, %cst_28 {dimension_numbers = #tpu.dot_dimension_numbers<[1], [0], [0], [1], [0, 0, 1, 1], [], []>} : vector<16x32xf32>, vector<32x64xf32>, vector<16x64xf32> -> vector<16x64xf32>
    %62 = vector.broadcast %3 : vector<1x64xf32> to vector<16x64xf32>
    %63 = arith.addf %61, %62 : vector<16x64xf32>
    %64 = arith.negf %63 : vector<16x64xf32>
    %65 = math.exp %64 : vector<16x64xf32>
    %cst_29 = arith.constant 1.000000e+00 : f32
    %66 = vector.broadcast %cst_29 : f32 to vector<16x64xf32>
    %67 = arith.addf %66, %65 : vector<16x64xf32>
    %68 = arith.divf %66, %67 : vector<16x64xf32>
    %69 = arith.mulf %60, %68 : vector<16x64xf32>
    %cst_30 = arith.constant 0.000000e+00 : f32
    %70 = vector.shape_cast %55 : vector<16x1xi1> to vector<16x1xi1>
    %71 = vector.broadcast %70 : vector<16x1xi1> to vector<16x64xi1>
    %72 = vector.broadcast %cst_30 : f32 to vector<16x64xf32>
    %73 = arith.select %71, %69, %72 : vector<16x64xi1>, vector<16x64xf32>
    %c48 = arith.constant 48 : index
    %c0_31 = arith.constant 0 : index
    %74 = vector.load %arg14[%c48, %c0_31] : memref<64x64xf32, #tpu.memory_space<vmem>>, vector<16x64xf32>
    tpu.vector_store %arg14[%c48, %c0_31], %73 {strides = array<i32>} : memref<64x64xf32, #tpu.memory_space<vmem>>, vector<16x64xf32>,
    %cst_32 = arith.constant 0.000000e+00 : f32
    %75 = vector.broadcast %cst_32 : f32 to vector<32x64xf32>
    %cst_33 = arith.constant 0.000000e+00 : f32
    %76 = vector.broadcast %cst_33 : f32 to vector<32x64xf32>
    %cst_34 = arith.constant 0.000000e+00 : f32
    %77 = vector.broadcast %cst_34 : f32 to vector<32x64xf32>
    %cst_35 = arith.constant 0.000000e+00 : f32
    %78 = vector.broadcast %cst_35 : f32 to vector<32x64xf32>
    %c1 = arith.constant 1 : index
    %c0_36 = arith.constant 0 : index
    %79 = vector.load %arg14[%c1, %c0_36] : memref<64x64xf32, #tpu.memory_space<vmem>>, vector<32x64xf32>
    %c0_37 = arith.constant 0 : index
    %c0_38 = arith.constant 0 : index
    %80 = vector.load %arg9[%c0_37, %c0_38] : memref<31x64xf32, #tpu.memory_space<vmem>>, vector<1x64xf32>
    %81 = vector.broadcast %80 : vector<1x64xf32> to vector<32x64xf32>
    %82 = arith.mulf %79, %81 : vector<32x64xf32>
    %83 = arith.addf %75, %82 : vector<32x64xf32>
    %c2 = arith.constant 2 : index
    %c0_39 = arith.constant 0 : index
    %84 = vector.load %arg14[%c2, %c0_39] : memref<64x64xf32, #tpu.memory_space<vmem>>, vector<32x64xf32>
    %c1_40 = arith.constant 1 : index
    %c0_41 = arith.constant 0 : index
    %85 = vector.load %arg9[%c1_40, %c0_41] : memref<31x64xf32, #tpu.memory_space<vmem>>, vector<1x64xf32>
    %86 = vector.broadcast %85 : vector<1x64xf32> to vector<32x64xf32>
    %87 = arith.mulf %84, %86 : vector<32x64xf32>
    %88 = arith.addf %76, %87 : vector<32x64xf32>
    %c3 = arith.constant 3 : index
    %c0_42 = arith.constant 0 : index
    %89 = vector.load %arg14[%c3, %c0_42] : memref<64x64xf32, #tpu.memory_space<vmem>>, vector<32x64xf32>
    %c2_43 = arith.constant 2 : index
    %c0_44 = arith.constant 0 : index
    %90 = vector.load %arg9[%c2_43, %c0_44] : memref<31x64xf32, #tpu.memory_space<vmem>>, vector<1x64xf32>
    %91 = vector.broadcast %90 : vector<1x64xf32> to vector<32x64xf32>
    %92 = arith.mulf %89, %91 : vector<32x64xf32>
    %93 = arith.addf %77, %92 : vector<32x64xf32>
    %c4 = arith.constant 4 : index
    %c0_45 = arith.constant 0 : index
    %94 = vector.load %arg14[%c4, %c0_45] : memref<64x64xf32, #tpu.memory_space<vmem>>, vector<32x64xf32>
    %c3_46 = arith.constant 3 : index
    %c0_47 = arith.constant 0 : index
    %95 = vector.load %arg9[%c3_46, %c0_47] : memref<31x64xf32, #tpu.memory_space<vmem>>, vector<1x64xf32>
    %96 = vector.broadcast %95 : vector<1x64xf32> to vector<32x64xf32>
    %97 = arith.mulf %94, %96 : vector<32x64xf32>
    %98 = arith.addf %78, %97 : vector<32x64xf32>
    %c5 = arith.constant 5 : index
    %c0_48 = arith.constant 0 : index
    %99 = vector.load %arg14[%c5, %c0_48] : memref<64x64xf32, #tpu.memory_space<vmem>>, vector<32x64xf32>
    %c4_49 = arith.constant 4 : index
    %c0_50 = arith.constant 0 : index
    %100 = vector.load %arg9[%c4_49, %c0_50] : memref<31x64xf32, #tpu.memory_space<vmem>>, vector<1x64xf32>
    %101 = vector.broadcast %100 : vector<1x64xf32> to vector<32x64xf32>
    %102 = arith.mulf %99, %101 : vector<32x64xf32>
    %103 = arith.addf %83, %102 : vector<32x64xf32>
    %c6 = arith.constant 6 : index
    %c0_51 = arith.constant 0 : index
    %104 = vector.load %arg14[%c6, %c0_51] : memref<64x64xf32, #tpu.memory_space<vmem>>, vector<32x64xf32>
    %c5_52 = arith.constant 5 : index
    %c0_53 = arith.constant 0 : index
    %105 = vector.load %arg9[%c5_52, %c0_53] : memref<31x64xf32, #tpu.memory_space<vmem>>, vector<1x64xf32>
    %106 = vector.broadcast %105 : vector<1x64xf32> to vector<32x64xf32>
    %107 = arith.mulf %104, %106 : vector<32x64xf32>
    %108 = arith.addf %88, %107 : vector<32x64xf32>
    %c7 = arith.constant 7 : index
    %c0_54 = arith.constant 0 : index
    %109 = vector.load %arg14[%c7, %c0_54] : memref<64x64xf32, #tpu.memory_space<vmem>>, vector<32x64xf32>
    %c6_55 = arith.constant 6 : index
    %c0_56 = arith.constant 0 : index
    %110 = vector.load %arg9[%c6_55, %c0_56] : memref<31x64xf32, #tpu.memory_space<vmem>>, vector<1x64xf32>
    %111 = vector.broadcast %110 : vector<1x64xf32> to vector<32x64xf32>
    %112 = arith.mulf %109, %111 : vector<32x64xf32>
    %113 = arith.addf %93, %112 : vector<32x64xf32>
    %c8 = arith.constant 8 : index
    %c0_57 = arith.constant 0 : index
    %114 = vector.load %arg14[%c8, %c0_57] : memref<64x64xf32, #tpu.memory_space<vmem>>, vector<32x64xf32>
    %c7_58 = arith.constant 7 : index
    %c0_59 = arith.constant 0 : index
    %115 = vector.load %arg9[%c7_58, %c0_59] : memref<31x64xf32, #tpu.memory_space<vmem>>, vector<1x64xf32>
    %116 = vector.broadcast %115 : vector<1x64xf32> to vector<32x64xf32>
    %117 = arith.mulf %114, %116 : vector<32x64xf32>
    %118 = arith.addf %98, %117 : vector<32x64xf32>
    %c9 = arith.constant 9 : index
    %c0_60 = arith.constant 0 : index
    %119 = vector.load %arg14[%c9, %c0_60] : memref<64x64xf32, #tpu.memory_space<vmem>>, vector<32x64xf32>
    %c8_61 = arith.constant 8 : index
    %c0_62 = arith.constant 0 : index
    %120 = vector.load %arg9[%c8_61, %c0_62] : memref<31x64xf32, #tpu.memory_space<vmem>>, vector<1x64xf32>
    %121 = vector.broadcast %120 : vector<1x64xf32> to vector<32x64xf32>
    %122 = arith.mulf %119, %121 : vector<32x64xf32>
    %123 = arith.addf %103, %122 : vector<32x64xf32>
    %c10 = arith.constant 10 : index
    %c0_63 = arith.constant 0 : index
    %124 = vector.load %arg14[%c10, %c0_63] : memref<64x64xf32, #tpu.memory_space<vmem>>, vector<32x64xf32>
    %c9_64 = arith.constant 9 : index
    %c0_65 = arith.constant 0 : index
    %125 = vector.load %arg9[%c9_64, %c0_65] : memref<31x64xf32, #tpu.memory_space<vmem>>, vector<1x64xf32>
    %126 = vector.broadcast %125 : vector<1x64xf32> to vector<32x64xf32>
    %127 = arith.mulf %124, %126 : vector<32x64xf32>
    %128 = arith.addf %108, %127 : vector<32x64xf32>
    %c11 = arith.constant 11 : index
    %c0_66 = arith.constant 0 : index
    %129 = vector.load %arg14[%c11, %c0_66] : memref<64x64xf32, #tpu.memory_space<vmem>>, vector<32x64xf32>
    %c10_67 = arith.constant 10 : index
    %c0_68 = arith.constant 0 : index
    %130 = vector.load %arg9[%c10_67, %c0_68] : memref<31x64xf32, #tpu.memory_space<vmem>>, vector<1x64xf32>
    %131 = vector.broadcast %130 : vector<1x64xf32> to vector<32x64xf32>
    %132 = arith.mulf %129, %131 : vector<32x64xf32>
    %133 = arith.addf %113, %132 : vector<32x64xf32>
    %c12 = arith.constant 12 : index
    %c0_69 = arith.constant 0 : index
    %134 = vector.load %arg14[%c12, %c0_69] : memref<64x64xf32, #tpu.memory_space<vmem>>, vector<32x64xf32>
    %c11_70 = arith.constant 11 : index
    %c0_71 = arith.constant 0 : index
    %135 = vector.load %arg9[%c11_70, %c0_71] : memref<31x64xf32, #tpu.memory_space<vmem>>, vector<1x64xf32>
    %136 = vector.broadcast %135 : vector<1x64xf32> to vector<32x64xf32>
    %137 = arith.mulf %134, %136 : vector<32x64xf32>
    %138 = arith.addf %118, %137 : vector<32x64xf32>
    %c13 = arith.constant 13 : index
    %c0_72 = arith.constant 0 : index
    %139 = vector.load %arg14[%c13, %c0_72] : memref<64x64xf32, #tpu.memory_space<vmem>>, vector<32x64xf32>
    %c12_73 = arith.constant 12 : index
    %c0_74 = arith.constant 0 : index
    %140 = vector.load %arg9[%c12_73, %c0_74] : memref<31x64xf32, #tpu.memory_space<vmem>>, vector<1x64xf32>
    %141 = vector.broadcast %140 : vector<1x64xf32> to vector<32x64xf32>
    %142 = arith.mulf %139, %141 : vector<32x64xf32>
    %143 = arith.addf %123, %142 : vector<32x64xf32>
    %c14 = arith.constant 14 : index
    %c0_75 = arith.constant 0 : index
    %144 = vector.load %arg14[%c14, %c0_75] : memref<64x64xf32, #tpu.memory_space<vmem>>, vector<32x64xf32>
    %c13_76 = arith.constant 13 : index
    %c0_77 = arith.constant 0 : index
    %145 = vector.load %arg9[%c13_76, %c0_77] : memref<31x64xf32, #tpu.memory_space<vmem>>, vector<1x64xf32>
    %146 = vector.broadcast %145 : vector<1x64xf32> to vector<32x64xf32>
    %147 = arith.mulf %144, %146 : vector<32x64xf32>
    %148 = arith.addf %128, %147 : vector<32x64xf32>
    %c15 = arith.constant 15 : index
    %c0_78 = arith.constant 0 : index
    %149 = vector.load %arg14[%c15, %c0_78] : memref<64x64xf32, #tpu.memory_space<vmem>>, vector<32x64xf32>
    %c14_79 = arith.constant 14 : index
    %c0_80 = arith.constant 0 : index
    %150 = vector.load %arg9[%c14_79, %c0_80] : memref<31x64xf32, #tpu.memory_space<vmem>>, vector<1x64xf32>
    %151 = vector.broadcast %150 : vector<1x64xf32> to vector<32x64xf32>
    %152 = arith.mulf %149, %151 : vector<32x64xf32>
    %153 = arith.addf %133, %152 : vector<32x64xf32>
    %c16_81 = arith.constant 16 : index
    %c0_82 = arith.constant 0 : index
    %154 = vector.load %arg14[%c16_81, %c0_82] : memref<64x64xf32, #tpu.memory_space<vmem>>, vector<32x64xf32>
    %c15_83 = arith.constant 15 : index
    %c0_84 = arith.constant 0 : index
    %155 = vector.load %arg9[%c15_83, %c0_84] : memref<31x64xf32, #tpu.memory_space<vmem>>, vector<1x64xf32>
    %156 = vector.broadcast %155 : vector<1x64xf32> to vector<32x64xf32>
    %157 = arith.mulf %154, %156 : vector<32x64xf32>
    %158 = arith.addf %138, %157 : vector<32x64xf32>
    %c17 = arith.constant 17 : index
    %c0_85 = arith.constant 0 : index
    %159 = vector.load %arg14[%c17, %c0_85] : memref<64x64xf32, #tpu.memory_space<vmem>>, vector<32x64xf32>
    %c16_86 = arith.constant 16 : index
    %c0_87 = arith.constant 0 : index
    %160 = vector.load %arg9[%c16_86, %c0_87] : memref<31x64xf32, #tpu.memory_space<vmem>>, vector<1x64xf32>
    %161 = vector.broadcast %160 : vector<1x64xf32> to vector<32x64xf32>
    %162 = arith.mulf %159, %161 : vector<32x64xf32>
    %163 = arith.addf %143, %162 : vector<32x64xf32>
    %c18 = arith.constant 18 : index
    %c0_88 = arith.constant 0 : index
    %164 = vector.load %arg14[%c18, %c0_88] : memref<64x64xf32, #tpu.memory_space<vmem>>, vector<32x64xf32>
    %c17_89 = arith.constant 17 : index
    %c0_90 = arith.constant 0 : index
    %165 = vector.load %arg9[%c17_89, %c0_90] : memref<31x64xf32, #tpu.memory_space<vmem>>, vector<1x64xf32>
    %166 = vector.broadcast %165 : vector<1x64xf32> to vector<32x64xf32>
    %167 = arith.mulf %164, %166 : vector<32x64xf32>
    %168 = arith.addf %148, %167 : vector<32x64xf32>
    %c19 = arith.constant 19 : index
    %c0_91 = arith.constant 0 : index
    %169 = vector.load %arg14[%c19, %c0_91] : memref<64x64xf32, #tpu.memory_space<vmem>>, vector<32x64xf32>
    %c18_92 = arith.constant 18 : index
    %c0_93 = arith.constant 0 : index
    %170 = vector.load %arg9[%c18_92, %c0_93] : memref<31x64xf32, #tpu.memory_space<vmem>>, vector<1x64xf32>
    %171 = vector.broadcast %170 : vector<1x64xf32> to vector<32x64xf32>
    %172 = arith.mulf %169, %171 : vector<32x64xf32>
    %173 = arith.addf %153, %172 : vector<32x64xf32>
    %c20 = arith.constant 20 : index
    %c0_94 = arith.constant 0 : index
    %174 = vector.load %arg14[%c20, %c0_94] : memref<64x64xf32, #tpu.memory_space<vmem>>, vector<32x64xf32>
    %c19_95 = arith.constant 19 : index
    %c0_96 = arith.constant 0 : index
    %175 = vector.load %arg9[%c19_95, %c0_96] : memref<31x64xf32, #tpu.memory_space<vmem>>, vector<1x64xf32>
    %176 = vector.broadcast %175 : vector<1x64xf32> to vector<32x64xf32>
    %177 = arith.mulf %174, %176 : vector<32x64xf32>
    %178 = arith.addf %158, %177 : vector<32x64xf32>
    %c21 = arith.constant 21 : index
    %c0_97 = arith.constant 0 : index
    %179 = vector.load %arg14[%c21, %c0_97] : memref<64x64xf32, #tpu.memory_space<vmem>>, vector<32x64xf32>
    %c20_98 = arith.constant 20 : index
    %c0_99 = arith.constant 0 : index
    %180 = vector.load %arg9[%c20_98, %c0_99] : memref<31x64xf32, #tpu.memory_space<vmem>>, vector<1x64xf32>
    %181 = vector.broadcast %180 : vector<1x64xf32> to vector<32x64xf32>
    %182 = arith.mulf %179, %181 : vector<32x64xf32>
    %183 = arith.addf %163, %182 : vector<32x64xf32>
    %c22 = arith.constant 22 : index
    %c0_100 = arith.constant 0 : index
    %184 = vector.load %arg14[%c22, %c0_100] : memref<64x64xf32, #tpu.memory_space<vmem>>, vector<32x64xf32>
    %c21_101 = arith.constant 21 : index
    %c0_102 = arith.constant 0 : index
    %185 = vector.load %arg9[%c21_101, %c0_102] : memref<31x64xf32, #tpu.memory_space<vmem>>, vector<1x64xf32>
    %186 = vector.broadcast %185 : vector<1x64xf32> to vector<32x64xf32>
    %187 = arith.mulf %184, %186 : vector<32x64xf32>
    %188 = arith.addf %168, %187 : vector<32x64xf32>
    %c23 = arith.constant 23 : index
    %c0_103 = arith.constant 0 : index
    %189 = vector.load %arg14[%c23, %c0_103] : memref<64x64xf32, #tpu.memory_space<vmem>>, vector<32x64xf32>
    %c22_104 = arith.constant 22 : index
    %c0_105 = arith.constant 0 : index
    %190 = vector.load %arg9[%c22_104, %c0_105] : memref<31x64xf32, #tpu.memory_space<vmem>>, vector<1x64xf32>
    %191 = vector.broadcast %190 : vector<1x64xf32> to vector<32x64xf32>
    %192 = arith.mulf %189, %191 : vector<32x64xf32>
    %193 = arith.addf %173, %192 : vector<32x64xf32>
    %c24 = arith.constant 24 : index
    %c0_106 = arith.constant 0 : index
    %194 = vector.load %arg14[%c24, %c0_106] : memref<64x64xf32, #tpu.memory_space<vmem>>, vector<32x64xf32>
    %c23_107 = arith.constant 23 : index
    %c0_108 = arith.constant 0 : index
    %195 = vector.load %arg9[%c23_107, %c0_108] : memref<31x64xf32, #tpu.memory_space<vmem>>, vector<1x64xf32>
    %196 = vector.broadcast %195 : vector<1x64xf32> to vector<32x64xf32>
    %197 = arith.mulf %194, %196 : vector<32x64xf32>
    %198 = arith.addf %178, %197 : vector<32x64xf32>
    %c25 = arith.constant 25 : index
    %c0_109 = arith.constant 0 : index
    %199 = vector.load %arg14[%c25, %c0_109] : memref<64x64xf32, #tpu.memory_space<vmem>>, vector<32x64xf32>
    %c24_110 = arith.constant 24 : index
    %c0_111 = arith.constant 0 : index
    %200 = vector.load %arg9[%c24_110, %c0_111] : memref<31x64xf32, #tpu.memory_space<vmem>>, vector<1x64xf32>
    %201 = vector.broadcast %200 : vector<1x64xf32> to vector<32x64xf32>
    %202 = arith.mulf %199, %201 : vector<32x64xf32>
    %203 = arith.addf %183, %202 : vector<32x64xf32>
    %c26 = arith.constant 26 : index
    %c0_112 = arith.constant 0 : index
    %204 = vector.load %arg14[%c26, %c0_112] : memref<64x64xf32, #tpu.memory_space<vmem>>, vector<32x64xf32>
    %c25_113 = arith.constant 25 : index
    %c0_114 = arith.constant 0 : index
    %205 = vector.load %arg9[%c25_113, %c0_114] : memref<31x64xf32, #tpu.memory_space<vmem>>, vector<1x64xf32>
    %206 = vector.broadcast %205 : vector<1x64xf32> to vector<32x64xf32>
    %207 = arith.mulf %204, %206 : vector<32x64xf32>
    %208 = arith.addf %188, %207 : vector<32x64xf32>
    %c27 = arith.constant 27 : index
    %c0_115 = arith.constant 0 : index
    %209 = vector.load %arg14[%c27, %c0_115] : memref<64x64xf32, #tpu.memory_space<vmem>>, vector<32x64xf32>
    %c26_116 = arith.constant 26 : index
    %c0_117 = arith.constant 0 : index
    %210 = vector.load %arg9[%c26_116, %c0_117] : memref<31x64xf32, #tpu.memory_space<vmem>>, vector<1x64xf32>
    %211 = vector.broadcast %210 : vector<1x64xf32> to vector<32x64xf32>
    %212 = arith.mulf %209, %211 : vector<32x64xf32>
    %213 = arith.addf %193, %212 : vector<32x64xf32>
    %c28 = arith.constant 28 : index
    %c0_118 = arith.constant 0 : index
    %214 = vector.load %arg14[%c28, %c0_118] : memref<64x64xf32, #tpu.memory_space<vmem>>, vector<32x64xf32>
    %c27_119 = arith.constant 27 : index
    %c0_120 = arith.constant 0 : index
    %215 = vector.load %arg9[%c27_119, %c0_120] : memref<31x64xf32, #tpu.memory_space<vmem>>, vector<1x64xf32>
    %216 = vector.broadcast %215 : vector<1x64xf32> to vector<32x64xf32>
    %217 = arith.mulf %214, %216 : vector<32x64xf32>
    %218 = arith.addf %198, %217 : vector<32x64xf32>
    %c29 = arith.constant 29 : index
    %c0_121 = arith.constant 0 : index
    %219 = vector.load %arg14[%c29, %c0_121] : memref<64x64xf32, #tpu.memory_space<vmem>>, vector<32x64xf32>
    %c28_122 = arith.constant 28 : index
    %c0_123 = arith.constant 0 : index
    %220 = vector.load %arg9[%c28_122, %c0_123] : memref<31x64xf32, #tpu.memory_space<vmem>>, vector<1x64xf32>
    %221 = vector.broadcast %220 : vector<1x64xf32> to vector<32x64xf32>
    %222 = arith.mulf %219, %221 : vector<32x64xf32>
    %223 = arith.addf %203, %222 : vector<32x64xf32>
    %c30 = arith.constant 30 : index
    %c0_124 = arith.constant 0 : index
    %224 = vector.load %arg14[%c30, %c0_124] : memref<64x64xf32, #tpu.memory_space<vmem>>, vector<32x64xf32>
    %c29_125 = arith.constant 29 : index
    %c0_126 = arith.constant 0 : index
    %225 = vector.load %arg9[%c29_125, %c0_126] : memref<31x64xf32, #tpu.memory_space<vmem>>, vector<1x64xf32>
    %226 = vector.broadcast %225 : vector<1x64xf32> to vector<32x64xf32>
    %227 = arith.mulf %224, %226 : vector<32x64xf32>
    %228 = arith.addf %208, %227 : vector<32x64xf32>
    %c31 = arith.constant 31 : index
    %c0_127 = arith.constant 0 : index
    %229 = vector.load %arg14[%c31, %c0_127] : memref<64x64xf32, #tpu.memory_space<vmem>>, vector<32x64xf32>
    %c30_128 = arith.constant 30 : index
    %c0_129 = arith.constant 0 : index
    %230 = vector.load %arg9[%c30_128, %c0_129] : memref<31x64xf32, #tpu.memory_space<vmem>>, vector<1x64xf32>
    %231 = vector.broadcast %230 : vector<1x64xf32> to vector<32x64xf32>
    %232 = arith.mulf %229, %231 : vector<32x64xf32>
    %233 = arith.addf %213, %232 : vector<32x64xf32>
    %234 = arith.addf %223, %228 : vector<32x64xf32>
    %235 = arith.addf %233, %218 : vector<32x64xf32>
    %236 = arith.addf %234, %235 : vector<32x64xf32>
    %c0_130 = arith.constant 0 : index
    %c0_131 = arith.constant 0 : index
    %237 = vector.load %arg10[%c0_130, %c0_131] : memref<1x64xf32, #tpu.memory_space<vmem>>, vector<1x64xf32>
    %238 = vector.broadcast %237 : vector<1x64xf32> to vector<32x64xf32>
    %239 = arith.addf %236, %238 : vector<32x64xf32>
    %240 = arith.negf %239 : vector<32x64xf32>
    %241 = math.exp %240 : vector<32x64xf32>
    %cst_132 = arith.constant 1.000000e+00 : f32
    %242 = vector.broadcast %cst_132 : f32 to vector<32x64xf32>
    %243 = arith.addf %242, %241 : vector<32x64xf32>
    %244 = arith.divf %242, %243 : vector<32x64xf32>
    %245 = arith.mulf %239, %244 : vector<32x64xf32>
    %c0_133 = arith.constant 0 : index
    %c0_134 = arith.constant 0 : index
    %246 = vector.load %arg11[%c0_133, %c0_134] : memref<64x32xf32, #tpu.memory_space<vmem>>, vector<64x32xf32>
    %cst_135 = arith.constant dense<0.000000e+00> : vector<32x32xf32>
    %247 = tpu.matmul %245, %246, %cst_135 {dimension_numbers = #tpu.dot_dimension_numbers<[1], [0], [0], [1], [0, 0, 1, 1], [], []>} : vector<32x64xf32>, vector<64x32xf32>, vector<32x32xf32> -> vector<32x32xf32>
    %c0_136 = arith.constant 0 : index
    %c0_137 = arith.constant 0 : index
    %248 = vector.load %arg12[%c0_136, %c0_137] : memref<1x32xf32, #tpu.memory_space<vmem>>, vector<1x32xf32>
    %249 = vector.broadcast %248 : vector<1x32xf32> to vector<32x32xf32>
    %250 = arith.addf %247, %249 : vector<32x32xf32>
    %251 = arith.addf %5, %250 : vector<32x32xf32>
    %c0_138 = arith.constant 0 : index
    %c0_139 = arith.constant 0 : index
    %c0_140 = arith.constant 0 : index
    %252 = vector.load %arg13[%c0_138, %c0_139, %c0_140] : memref<1x32x32xf32, #tpu.memory_space<vmem>>, vector<1x32x32xf32>
    %253 = vector.shape_cast %252 : vector<1x32x32xf32> to vector<32x32xf32>
    %254 = vector.shape_cast %251 : vector<32x32xf32> to vector<1x32x32xf32>
    tpu.vector_store %arg13[%c0_138, %c0_139, %c0_140], %254 {strides = array<i32>} : memref<1x32x32xf32, #tpu.memory_space<vmem>>, vector<1x32x32xf32>,
    return
  }
  func.func @transform_0(%arg0: i32, %arg1: i32) -> (i32, i32, i32) {
    %c0_i32 = arith.constant 0 : i32
    %c0_i32_0 = arith.constant 0 : i32
    return %arg0, %arg1, %c0_i32 : i32, i32, i32
  }
  func.func @transform_1(%arg0: i32, %arg1: i32) -> (i32, i32, i32) {
    %c2_i32 = arith.constant 2 : i32
    %0 = arith.muli %arg1, %c2_i32 : i32
    %c1_i32 = arith.constant 1 : i32
    %1 = arith.subi %0, %c1_i32 : i32
    %c0_i32 = arith.constant 0 : i32
    %2 = arith.maxsi %1, %c0_i32 : i32
    %c0_i32_0 = arith.constant 0 : i32
    %c0_i32_1 = arith.constant 0 : i32
    return %arg0, %2, %c0_i32_0 : i32, i32, i32
  }
  func.func @transform_2(%arg0: i32, %arg1: i32) -> (i32, i32, i32) {
    %c1_i32 = arith.constant 1 : i32
    %0 = arith.addi %arg1, %c1_i32 : i32
    %c2_i32 = arith.constant 2 : i32
    %1 = arith.muli %0, %c2_i32 : i32
    %c3_i32 = arith.constant 3 : i32
    %2 = arith.minsi %1, %c3_i32 : i32
    %c0_i32 = arith.constant 0 : i32
    %c0_i32_0 = arith.constant 0 : i32
    return %arg0, %2, %c0_i32 : i32, i32, i32
  }
  func.func @transform_3(%arg0: i32, %arg1: i32) -> (i32, i32) {
    %c0_i32 = arith.constant 0 : i32
    %c0_i32_0 = arith.constant 0 : i32
    %c0_i32_1 = arith.constant 0 : i32
    return %c0_i32, %c0_i32_0 : i32, i32
  }
  func.func @transform_4(%arg0: i32, %arg1: i32) -> (i32, i32) {
    %c0_i32 = arith.constant 0 : i32
    %c0_i32_0 = arith.constant 0 : i32
    %c0_i32_1 = arith.constant 0 : i32
    return %c0_i32, %c0_i32_0 : i32, i32
  }
  func.func @transform_5(%arg0: i32, %arg1: i32) -> (i32, i32) {
    %c0_i32 = arith.constant 0 : i32
    %c0_i32_0 = arith.constant 0 : i32
    %c0_i32_1 = arith.constant 0 : i32
    return %c0_i32, %c0_i32_0 : i32, i32
  }
  func.func @transform_6(%arg0: i32, %arg1: i32) -> (i32, i32) {
    %c0_i32 = arith.constant 0 : i32
    %c0_i32_0 = arith.constant 0 : i32
    %c0_i32_1 = arith.constant 0 : i32
    return %c0_i32, %c0_i32_0 : i32, i32
  }
  func.func @transform_7(%arg0: i32, %arg1: i32) -> (i32, i32) {
    %c0_i32 = arith.constant 0 : i32
    %c0_i32_0 = arith.constant 0 : i32
    %c0_i32_1 = arith.constant 0 : i32
    return %c0_i32, %c0_i32_0 : i32, i32
  }
  func.func @transform_8(%arg0: i32, %arg1: i32) -> (i32, i32) {
    %c0_i32 = arith.constant 0 : i32
    %c0_i32_0 = arith.constant 0 : i32
    %c0_i32_1 = arith.constant 0 : i32
    return %c0_i32, %c0_i32_0 : i32, i32
  }
  func.func @transform_9(%arg0: i32, %arg1: i32) -> (i32, i32) {
    %c0_i32 = arith.constant 0 : i32
    %c0_i32_0 = arith.constant 0 : i32
    %c0_i32_1 = arith.constant 0 : i32
    return %c0_i32, %c0_i32_0 : i32, i32
  }
  func.func @transform_10(%arg0: i32, %arg1: i32) -> (i32, i32) {
    %c0_i32 = arith.constant 0 : i32
    %c0_i32_0 = arith.constant 0 : i32
    %c0_i32_1 = arith.constant 0 : i32
    return %c0_i32, %c0_i32_0 : i32, i32
  }
  func.func @transform_11(%arg0: i32, %arg1: i32) -> (i32, i32, i32) {
    %c0_i32 = arith.constant 0 : i32
    %c0_i32_0 = arith.constant 0 : i32
    return %arg0, %arg1, %c0_i32 : i32, i32, i32
  }
}

</mosaic_0001>

<llo_original>
// kernel: tpu_custom_call.1
$region0: #{tpu_custom_call.1}
  #allocation0 [shape = 'u32[]', space=smem, size = 0x4, offset = 0x4, fixed_abs, tag = 'smem constant byte address 0x4 - core index']
  #allocation1 [shape = 'u32[72,128]{1,0:T(1,128)}', space=vmem, size = 0x9000, scoped, tag = 'internal scratch']
  #allocation2 [shape = 'f32[64,64]{1,0:T(8,128)}', space=vmem, size = 0x8000, scoped, tag = 'scratch operand']
  %s0 = inlined_call_operand.vmem [shape: f32[2,64,32], index: 0, kind: input, shape index: {}]
  %s1 = inlined_call_operand.vmem [shape: f32[2,64,32], index: 1, kind: input, shape index: {}]
  %s2 = inlined_call_operand.vmem [shape: f32[2,64,32], index: 2, kind: input, shape index: {}]
  %s3 = inlined_call_operand.vmem [shape: f32[32,64], index: 3, kind: input, shape index: {}]
  %s4 = inlined_call_operand.vmem [shape: f32[1,64], index: 4, kind: input, shape index: {}]
  %s5 = inlined_call_operand.vmem [shape: f32[32,64], index: 5, kind: input, shape index: {}]
  %s6 = inlined_call_operand.vmem [shape: f32[1,64], index: 6, kind: input, shape index: {}]
  %s7 = inlined_call_operand.vmem [shape: f32[31,64], index: 7, kind: input, shape index: {}]
  %s8 = inlined_call_operand.vmem [shape: f32[1,64], index: 8, kind: input, shape index: {}]
  %s9 = inlined_call_operand.vmem [shape: f32[64,32], index: 9, kind: input, shape index: {}]
  %s10 = inlined_call_operand.vmem [shape: f32[1,32], index: 10, kind: input, shape index: {}]
  %s11 = inlined_call_operand.vmem [shape: f32[2,64,32], index: 11, kind: output, shape index: {}]
  %s12 = sld [smem:[#allocation0]]
  $region77: #{tpu_custom_call.1} parent=0
    _
  %s14 = ssub.s32 1, %s12
  %s15 = scalar_select 0, %s14, %s12
  loop: start=0, step=1, limit=6
  $region2: #{tpu_custom_call.1} parent=0 // loop_pre_header
    _
  $region3: #{tpu_custom_call.1} parent=0 // loop_header
    %s17 = sphi 0, %s21
    %p18 = scmp.ge.s32.totalorder %s17, 6
    %s24 = sphi 0, %s36
    %s25 = sphi 0, %s32
    %s26 = sphi 0, %s24
    %s27 = sphi 0, %s25
    %s28 = sphi 0, %s26
    %s29 = sphi 0, %s27
    %s41 = sphi 0, %s43
    %s44 = sphi 0, %s41
    %s45 = sphi 0, %s44
    %s61 = sphi 0, %s45
    %s77 = sphi 0, %s79
    %s80 = sphi 0, %s77
    %s81 = sphi 0, %s80
    %s97 = sphi 0, %s81
    %s113 = sphi 0, %s115
    %s116 = sphi 0, %s113
    %s117 = sphi 0, %s116
    %s133 = sphi 0, %s117
    %s137 = sphi 0, %s137
    %s139 = sphi 0, %s137
    %s140 = sphi 0, %s139
    %s154 = sphi 0, %s140
    %s158 = sphi 0, %s158
    %s160 = sphi 0, %s158
    %s161 = sphi 0, %s160
    %s175 = sphi 0, %s161
    %s179 = sphi 0, %s179
    %s181 = sphi 0, %s179
    %s182 = sphi 0, %s181
    %s196 = sphi 0, %s182
    %s200 = sphi 0, %s200
    %s202 = sphi 0, %s200
    %s203 = sphi 0, %s202
    %s217 = sphi 0, %s203
    %s221 = sphi 0, %s221
    %s223 = sphi 0, %s221
    %s224 = sphi 0, %s223
    %s238 = sphi 0, %s224
    %s242 = sphi 0, %s242
    %s244 = sphi 0, %s242
    %s245 = sphi 0, %s244
    %s259 = sphi 0, %s245
    %s263 = sphi 0, %s263
    %s265 = sphi 0, %s263
    %s266 = sphi 0, %s265
    %s280 = sphi 0, %s266
    %s284 = sphi 0, %s284
    %s286 = sphi 0, %s284
    %s287 = sphi 0, %s286
    %s301 = sphi 0, %s287
    %s309 = sphi 0, %s311
    %s312 = sphi 0, %s309
    %s313 = sphi 0, %s312
    %s329 = sphi 0, %s313
  $region4: #{tpu_custom_call.1} parent=0 // loop_header_branch
    %20 = sbr.rel (%p18) target = $region8
  $region5: #{tpu_custom_call.1} parent=0 // loop_body
    %s22 = ssub.s32 %s17, 1
    %s23 = ssub.s32 %s17, 2
    %s30 = sadd.s32 1, %s25
    %p31 = scmp.ge.s32.totalorder %s30, 2
    %s32 = scalar_select %p31, 0, %s30
    %s33 = sadd.s32 1, %s24
    %s34 = scalar_select %p31, %s33, %s24
    %p35 = scmp.ge.s32.totalorder %s34, 2
    %s36 = scalar_select %p35, 0, %s34
    %s37 = ssub.s32 %s24, %s36
    %s38 = ssub.s32 %s25, %s32
    %s39 = sor.u32 %s37, %s38
    %p40 = scmp.eq.s32.totalorder %s39, 0
    %s42 = sadd.s32 %s41, 1
    %s43 = scalar_select %p40, %s41, %s42
    %p46 = pneg %p40
    %p47 = scmp.eq.s32.totalorder %s17, 3
    %p48 = por %p46, %p47
    %p49 = scmp.ne.s32.totalorder %s41, %s44
    %p50 = scmp.eq.s32.totalorder %s17, 0
    %p51 = por %p49, %p50
    %p52 = scmp.ne.s32.totalorder %s41, %s44
    %p53 = scmp.eq.s32.totalorder %s22, 3
    %p54 = por %p52, %p53
    %p55 = scmp.ne.s32.totalorder %s44, %s45
    %p56 = scmp.eq.s32.totalorder %s22, 0
    %p57 = por %p55, %p56
    %p58 = scmp.ne.s32.totalorder %s44, %s45
    %p59 = scmp.eq.s32.totalorder %s23, 3
    %p60 = por %p58, %p59
    %p62 = scmp.ne.s32.totalorder %s45, %s61
    %p63 = scmp.eq.s32.totalorder %s23, 0
    %p64 = por %p62, %p63
    %s65 = smul.u32 %s25, 2
    %s66 = ssub.s32 %s65, 1
    %p67 = scmp.gt.s32.totalorder %s66, 0
    %s68 = scalar_select %p67, %s66, 0
    %s69 = smul.u32 %s32, 2
    %s70 = ssub.s32 %s69, 1
    %p71 = scmp.gt.s32.totalorder %s70, 0
    %s72 = scalar_select %p71, %s70, 0
    %s73 = ssub.s32 %s24, %s36
    %s74 = ssub.s32 %s68, %s72
    %s75 = sor.u32 %s73, %s74
    %p76 = scmp.eq.s32.totalorder %s75, 0
    %s78 = sadd.s32 %s77, 1
    %s79 = scalar_select %p76, %s77, %s78
    %p82 = pneg %p76
    %p83 = scmp.eq.s32.totalorder %s17, 3
    %p84 = por %p82, %p83
    %p85 = scmp.ne.s32.totalorder %s77, %s80
    %p86 = scmp.eq.s32.totalorder %s17, 0
    %p87 = por %p85, %p86
    %p88 = scmp.ne.s32.totalorder %s77, %s80
    %p89 = scmp.eq.s32.totalorder %s22, 3
    %p90 = por %p88, %p89
    %p91 = scmp.ne.s32.totalorder %s80, %s81
    %p92 = scmp.eq.s32.totalorder %s22, 0
    %p93 = por %p91, %p92
    %p94 = scmp.ne.s32.totalorder %s80, %s81
    %p95 = scmp.eq.s32.totalorder %s23, 3
    %p96 = por %p94, %p95
    %p98 = scmp.ne.s32.totalorder %s81, %s97
    %p99 = scmp.eq.s32.totalorder %s23, 0
    %p100 = por %p98, %p99
    %s101 = sadd.s32 %s25, 1
    %s102 = smul.u32 %s101, 2
    %p103 = scmp.lt.s32.totalorder %s102, 3
    %s104 = scalar_select %p103, %s102, 3
    %s105 = sadd.s32 %s32, 1
    %s106 = smul.u32 %s105, 2
    %p107 = scmp.lt.s32.totalorder %s106, 3
    %s108 = scalar_select %p107, %s106, 3
    %s109 = ssub.s32 %s24, %s36
    %s110 = ssub.s32 %s104, %s108
    %s111 = sor.u32 %s109, %s110
    %p112 = scmp.eq.s32.totalorder %s111, 0
    %s114 = sadd.s32 %s113, 1
    %s115 = scalar_select %p112, %s113, %s114
    %p118 = pneg %p112
    %p119 = scmp.eq.s32.totalorder %s17, 3
    %p120 = por %p118, %p119
    %p121 = scmp.ne.s32.totalorder %s113, %s116
    %p122 = scmp.eq.s32.totalorder %s17, 0
    %p123 = por %p121, %p122
    %p124 = scmp.ne.s32.totalorder %s113, %s116
    %p125 = scmp.eq.s32.totalorder %s22, 3
    %p126 = por %p124, %p125
    %p127 = scmp.ne.s32.totalorder %s116, %s117
    %p128 = scmp.eq.s32.totalorder %s22, 0
    %p129 = por %p127, %p128
    %p130 = scmp.ne.s32.totalorder %s116, %s117
    %p131 = scmp.eq.s32.totalorder %s23, 3
    %p132 = por %p130, %p131
    %p134 = scmp.ne.s32.totalorder %s117, %s133
    %p135 = scmp.eq.s32.totalorder %s23, 0
    %p136 = por %p134, %p135
    %s138 = sadd.s32 %s137, 1
    %p141 = scmp.eq.s32.totalorder %s17, 3
    %p142 = scmp.ne.s32.totalorder %s137, %s139
    %p143 = scmp.eq.s32.totalorder %s17, 0
    %p144 = por %p142, %p143
    %p145 = scmp.ne.s32.totalorder %s137, %s139
    %p146 = scmp.eq.s32.totalorder %s22, 3
    %p147 = por %p145, %p146
    %p148 = scmp.ne.s32.totalorder %s139, %s140
    %p149 = scmp.eq.s32.totalorder %s22, 0
    %p150 = por %p148, %p149
    %p151 = scmp.ne.s32.totalorder %s139, %s140
    %p152 = scmp.eq.s32.totalorder %s23, 3
    %p153 = por %p151, %p152
    %p155 = scmp.ne.s32.totalorder %s140, %s154
    %p156 = scmp.eq.s32.totalorder %s23, 0
    %p157 = por %p155, %p156
    %s159 = sadd.s32 %s158, 1
    %p162 = scmp.eq.s32.totalorder %s17, 3
    %p163 = scmp.ne.s32.totalorder %s158, %s160
    %p164 = scmp.eq.s32.totalorder %s17, 0
    %p165 = por %p163, %p164
    %p166 = scmp.ne.s32.totalorder %s158, %s160
    %p167 = scmp.eq.s32.totalorder %s22, 3
    %p168 = por %p166, %p167
    %p169 = scmp.ne.s32.totalorder %s160, %s161
    %p170 = scmp.eq.s32.totalorder %s22, 0
    %p171 = por %p169, %p170
    %p172 = scmp.ne.s32.totalorder %s160, %s161
    %p173 = scmp.eq.s32.totalorder %s23, 3
    %p174 = por %p172, %p173
    %p176 = scmp.ne.s32.totalorder %s161, %s175
    %p177 = scmp.eq.s32.totalorder %s23, 0
    %p178 = por %p176, %p177
    %s180 = sadd.s32 %s179, 1
    %p183 = scmp.eq.s32.totalorder %s17, 3
    %p184 = scmp.ne.s32.totalorder %s179, %s181
    %p185 = scmp.eq.s32.totalorder %s17, 0
    %p186 = por %p184, %p185
    %p187 = scmp.ne.s32.totalorder %s179, %s181
    %p188 = scmp.eq.s32.totalorder %s22, 3
    %p189 = por %p187, %p188
    %p190 = scmp.ne.s32.totalorder %s181, %s182
    %p191 = scmp.eq.s32.totalorder %s22, 0
    %p192 = por %p190, %p191
    %p193 = scmp.ne.s32.totalorder %s181, %s182
    %p194 = scmp.eq.s32.totalorder %s23, 3
    %p195 = por %p193, %p194
    %p197 = scmp.ne.s32.totalorder %s182, %s196
    %p198 = scmp.eq.s32.totalorder %s23, 0
    %p199 = por %p197, %p198
    %s201 = sadd.s32 %s200, 1
    %p204 = scmp.eq.s32.totalorder %s17, 3
    %p205 = scmp.ne.s32.totalorder %s200, %s202
    %p206 = scmp.eq.s32.totalorder %s17, 0
    %p207 = por %p205, %p206
    %p208 = scmp.ne.s32.totalorder %s200, %s202
    %p209 = scmp.eq.s32.totalorder %s22, 3
    %p210 = por %p208, %p209
    %p211 = scmp.ne.s32.totalorder %s202, %s203
    %p212 = scmp.eq.s32.totalorder %s22, 0
    %p213 = por %p211, %p212
    %p214 = scmp.ne.s32.totalorder %s202, %s203
    %p215 = scmp.eq.s32.totalorder %s23, 3
    %p216 = por %p214, %p215
    %p218 = scmp.ne.s32.totalorder %s203, %s217
    %p219 = scmp.eq.s32.totalorder %s23, 0
    %p220 = por %p218, %p219
    %s222 = sadd.s32 %s221, 1
    %p225 = scmp.eq.s32.totalorder %s17, 3
    %p226 = scmp.ne.s32.totalorder %s221, %s223
    %p227 = scmp.eq.s32.totalorder %s17, 0
    %p228 = por %p226, %p227
    %p229 = scmp.ne.s32.totalorder %s221, %s223
    %p230 = scmp.eq.s32.totalorder %s22, 3
    %p231 = por %p229, %p230
    %p232 = scmp.ne.s32.totalorder %s223, %s224
    %p233 = scmp.eq.s32.totalorder %s22, 0
    %p234 = por %p232, %p233
    %p235 = scmp.ne.s32.totalorder %s223, %s224
    %p236 = scmp.eq.s32.totalorder %s23, 3
    %p237 = por %p235, %p236
    %p239 = scmp.ne.s32.totalorder %s224, %s238
    %p240 = scmp.eq.s32.totalorder %s23, 0
    %p241 = por %p239, %p240
    %s243 = sadd.s32 %s242, 1
    %p246 = scmp.eq.s32.totalorder %s17, 3
    %p247 = scmp.ne.s32.totalorder %s242, %s244
    %p248 = scmp.eq.s32.totalorder %s17, 0
    %p249 = por %p247, %p248
    %p250 = scmp.ne.s32.totalorder %s242, %s244
    %p251 = scmp.eq.s32.totalorder %s22, 3
    %p252 = por %p250, %p251
    %p253 = scmp.ne.s32.totalorder %s244, %s245
    %p254 = scmp.eq.s32.totalorder %s22, 0
    %p255 = por %p253, %p254
    %p256 = scmp.ne.s32.totalorder %s244, %s245
    %p257 = scmp.eq.s32.totalorder %s23, 3
    %p258 = por %p256, %p257
    %p260 = scmp.ne.s32.totalorder %s245, %s259
    %p261 = scmp.eq.s32.totalorder %s23, 0
    %p262 = por %p260, %p261
    %s264 = sadd.s32 %s263, 1
    %p267 = scmp.eq.s32.totalorder %s17, 3
    %p268 = scmp.ne.s32.totalorder %s263, %s265
    %p269 = scmp.eq.s32.totalorder %s17, 0
    %p270 = por %p268, %p269
    %p271 = scmp.ne.s32.totalorder %s263, %s265
    %p272 = scmp.eq.s32.totalorder %s22, 3
    %p273 = por %p271, %p272
    %p274 = scmp.ne.s32.totalorder %s265, %s266
    %p275 = scmp.eq.s32.totalorder %s22, 0
    %p276 = por %p274, %p275
    %p277 = scmp.ne.s32.totalorder %s265, %s266
    %p278 = scmp.eq.s32.totalorder %s23, 3
    %p279 = por %p277, %p278
    %p281 = scmp.ne.s32.totalorder %s266, %s280
    %p282 = scmp.eq.s32.totalorder %s23, 0
    %p283 = por %p281, %p282
    %s285 = sadd.s32 %s284, 1
    %p288 = scmp.eq.s32.totalorder %s17, 3
    %p289 = scmp.ne.s32.totalorder %s284, %s286
    %p290 = scmp.eq.s32.totalorder %s17, 0
    %p291 = por %p289, %p290
    %p292 = scmp.ne.s32.totalorder %s284, %s286
    %p293 = scmp.eq.s32.totalorder %s22, 3
    %p294 = por %p292, %p293
    %p295 = scmp.ne.s32.totalorder %s286, %s287
    %p296 = scmp.eq.s32.totalorder %s22, 0
    %p297 = por %p295, %p296
    %p298 = scmp.ne.s32.totalorder %s286, %s287
    %p299 = scmp.eq.s32.totalorder %s23, 3
    %p300 = por %p298, %p299
    %p302 = scmp.ne.s32.totalorder %s287, %s301
    %p303 = scmp.eq.s32.totalorder %s23, 0
    %p304 = por %p302, %p303
    %s305 = ssub.s32 %s24, %s36
    %s306 = ssub.s32 %s25, %s32
    %s307 = sor.u32 %s305, %s306
    %p308 = scmp.eq.s32.totalorder %s307, 0
    %s310 = sadd.s32 %s309, 1
    %s311 = scalar_select %p308, %s309, %s310
    %p314 = pneg %p308
    %p315 = scmp.eq.s32.totalorder %s17, 3
    %p316 = por %p314, %p315
    %p317 = scmp.ne.s32.totalorder %s309, %s312
    %p318 = scmp.eq.s32.totalorder %s17, 0
    %p319 = por %p317, %p318
    %p320 = scmp.ne.s32.totalorder %s309, %s312
    %p321 = scmp.eq.s32.totalorder %s22, 3
    %p322 = por %p320, %p321
    %p323 = scmp.ne.s32.totalorder %s312, %s313
    %p324 = scmp.eq.s32.totalorder %s22, 0
    %p325 = por %p323, %p324
    %p326 = scmp.ne.s32.totalorder %s312, %s313
    %p327 = scmp.eq.s32.totalorder %s23, 3
    %p328 = por %p326, %p327
    %p330 = scmp.ne.s32.totalorder %s313, %s329
    %p331 = scmp.eq.s32.totalorder %s23, 0
    %p332 = por %p330, %p331
    %p333 = scmp.le.s32.totalorder 1, %s17
    %p334 = scmp.lt.s32.totalorder %s17, 5
    %p335 = pnand %p333, %p334
    %p336 = pneg %p335
    // Predicated region
    $region9: #{tpu_custom_call.1} parent=5 // pred_check
      _
    $region10: #{tpu_custom_call.1} parent=5 // pred_check_branch
      %338 = sbr.rel (%p335) target = $region12
    $region11: #{tpu_custom_call.1} parent=5 // pred_region
      %s339 = ssub.s32 %s17, 1
      // Predicated region
      $region13: #{tpu_custom_call.1} parent=11 // pred_check
        %p340 = pneg %p150
      $region14: #{tpu_custom_call.1} parent=11 // pred_check_branch
        %342 = sbr.rel (%p340) target = $region16
      $region15: #{tpu_custom_call.1} parent=11 // pred_region
        _
      $region16: #{tpu_custom_call.1} parent=11 // pred_fallthru
        _
      // Predicated region
      $region17: #{tpu_custom_call.1} parent=11 // pred_check
        %p343 = pneg %p171
      $region18: #{tpu_custom_call.1} parent=11 // pred_check_branch
        %345 = sbr.rel (%p343) target = $region20
      $region19: #{tpu_custom_call.1} parent=11 // pred_region
        _
      $region20: #{tpu_custom_call.1} parent=11 // pred_fallthru
        _
      // Predicated region
      $region21: #{tpu_custom_call.1} parent=11 // pred_check
        %p346 = pneg %p192
      $region22: #{tpu_custom_call.1} parent=11 // pred_check_branch
        %348 = sbr.rel (%p346) target = $region24
      $region23: #{tpu_custom_call.1} parent=11 // pred_region
        _
      $region24: #{tpu_custom_call.1} parent=11 // pred_fallthru
        _
      // Predicated region
      $region25: #{tpu_custom_call.1} parent=11 // pred_check
        %p349 = pneg %p213
      $region26: #{tpu_custom_call.1} parent=11 // pred_check_branch
        %351 = sbr.rel (%p349) target = $region28
      $region27: #{tpu_custom_call.1} parent=11 // pred_region
        _
      $region28: #{tpu_custom_call.1} parent=11 // pred_fallthru
        _
      // Predicated region
      $region29: #{tpu_custom_call.1} parent=11 // pred_check
        %p352 = pneg %p234
      $region30: #{tpu_custom_call.1} parent=11 // pred_check_branch
        %354 = sbr.rel (%p352) target = $region32
      $region31: #{tpu_custom_call.1} parent=11 // pred_region
        _
      $region32: #{tpu_custom_call.1} parent=11 // pred_fallthru
        _
      // Predicated region
      $region33: #{tpu_custom_call.1} parent=11 // pred_check
        %p355 = pneg %p255
      $region34: #{tpu_custom_call.1} parent=11 // pred_check_branch
        %357 = sbr.rel (%p355) target = $region36
      $region35: #{tpu_custom_call.1} parent=11 // pred_region
        _
      $region36: #{tpu_custom_call.1} parent=11 // pred_fallthru
        _
      // Predicated region
      $region37: #{tpu_custom_call.1} parent=11 // pred_check
        %p358 = pneg %p276
      $region38: #{tpu_custom_call.1} parent=11 // pred_check_branch
        %360 = sbr.rel (%p358) target = $region40
      $region39: #{tpu_custom_call.1} parent=11 // pred_region
        _
      $region40: #{tpu_custom_call.1} parent=11 // pred_fallthru
        _
      // Predicated region
      $region41: #{tpu_custom_call.1} parent=11 // pred_check
        %p361 = pneg %p297
      $region42: #{tpu_custom_call.1} parent=11 // pred_check_branch
        %363 = sbr.rel (%p361) target = $region44
      $region43: #{tpu_custom_call.1} parent=11 // pred_region
        _
      $region44: #{tpu_custom_call.1} parent=11 // pred_fallthru
        _
    $region12: #{tpu_custom_call.1} parent=5 // pred_fallthru
      _
    %p364 = scmp.lt.s32.totalorder %s17, 4
    // Predicated region
    $region45: #{tpu_custom_call.1} parent=5 // pred_check
      %p365 = pneg %p364
    $region46: #{tpu_custom_call.1} parent=5 // pred_check_branch
      %367 = sbr.rel (%p365) target = $region48
    $region47: #{tpu_custom_call.1} parent=5 // pred_region
      // Predicated region
      $region49: #{tpu_custom_call.1} parent=47 // pred_check
        %p368 = pneg %p51
      $region50: #{tpu_custom_call.1} parent=47 // pred_check_branch
        %370 = sbr.rel (%p368) target = $region52
      $region51: #{tpu_custom_call.1} parent=47 // pred_region
        %s371 = smul.u32 4, %s25
        %p372 = scmp.lt.s32.totalorder %s24, 1
        %s373 = scalar_select %p372, %s24, 1
        %p374 = scmp.lt.s32.totalorder %s371, 7
        %s375 = scalar_select %p374, %s371, 7
        %s376 = smul.addr %s373, 8
        %s377 = sadd.s32 %s375, %s376
        %s378 = smul.addr %s377, 8
        %s379 = scalar_lea.vmem %s0, %s378
        %s380 = smul.u32 4, %s25
      $region52: #{tpu_custom_call.1} parent=47 // pred_fallthru
        _
      // Predicated region
      $region53: #{tpu_custom_call.1} parent=47 // pred_check
        %p381 = pneg %p87
      $region54: #{tpu_custom_call.1} parent=47 // pred_check_branch
        %383 = sbr.rel (%p381) target = $region56
      $region55: #{tpu_custom_call.1} parent=47 // pred_region
        %s384 = smul.u32 %s25, 2
        %s385 = ssub.s32 %s384, 1
        %p386 = scmp.gt.s32.totalorder %s385, 0
        %s387 = scalar_select %p386, %s385, 0
        %s388 = smul.u32 2, %s387
        %p389 = scmp.lt.s32.totalorder %s24, 1
        %s390 = scalar_select %p389, %s24, 1
        %p391 = scmp.lt.s32.totalorder %s388, 7
        %s392 = scalar_select %p391, %s388, 7
        %s393 = smul.addr %s390, 8
        %s394 = sadd.s32 %s392, %s393
        %s395 = smul.addr %s394, 8
        %s396 = scalar_lea.vmem %s1, %s395
        %s397 = smul.u32 %s25, 2
        %s398 = ssub.s32 %s397, 1
        %p399 = scmp.gt.s32.totalorder %s398, 0
        %s400 = scalar_select %p399, %s398, 0
        %s401 = smul.u32 2, %s400
      $region56: #{tpu_custom_call.1} parent=47 // pred_fallthru
        _
      // Predicated region
      $region57: #{tpu_custom_call.1} parent=47 // pred_check
        %p402 = pneg %p123
      $region58: #{tpu_custom_call.1} parent=47 // pred_check_branch
        %404 = sbr.rel (%p402) target = $region60
      $region59: #{tpu_custom_call.1} parent=47 // pred_region
        %s405 = sadd.s32 %s25, 1
        %s406 = smul.u32 %s405, 2
        %p407 = scmp.lt.s32.totalorder %s406, 3
        %s408 = scalar_select %p407, %s406, 3
        %s409 = smul.u32 2, %s408
        %p410 = scmp.lt.s32.totalorder %s24, 1
        %s411 = scalar_select %p410, %s24, 1
        %p412 = scmp.lt.s32.totalorder %s409, 7
        %s413 = scalar_select %p412, %s409, 7
        %s414 = smul.addr %s411, 8
        %s415 = sadd.s32 %s413, %s414
        %s416 = smul.addr %s415, 8
        %s417 = scalar_lea.vmem %s2, %s416
        %s418 = sadd.s32 %s25, 1
        %s419 = smul.u32 %s418, 2
        %p420 = scmp.lt.s32.totalorder %s419, 3
        %s421 = scalar_select %p420, %s419, 3
        %s422 = smul.u32 2, %s421
      $region60: #{tpu_custom_call.1} parent=47 // pred_fallthru
        _
    $region48: #{tpu_custom_call.1} parent=5 // pred_fallthru
      _
    %p423 = scmp.le.s32.totalorder 1, %s17
    %p424 = scmp.lt.s32.totalorder %s17, 5
    %p425 = pnand %p423, %p424
    %p426 = pneg %p425
    // Predicated region
    $region61: #{tpu_custom_call.1} parent=5 // pred_check
      _
    $region62: #{tpu_custom_call.1} parent=5 // pred_check_branch
      %428 = sbr.rel (%p425) target = $region64
    $region63: #{tpu_custom_call.1} parent=5 // pred_region
      %s429 = ssub.s32 %s17, 1
      %s430 = smul.u32 4, %s27
      %p431 = scmp.lt.s32.totalorder %s26, 1
      %s432 = scalar_select %p431, %s26, 1
      %p433 = scmp.lt.s32.totalorder %s430, 7
      %s434 = scalar_select %p433, %s430, 7
      %s435 = smul.addr %s432, 8
      %s436 = sadd.s32 %s434, %s435
      %s437 = smul.addr %s436, 8
      %s438 = scalar_lea.vmem %s0, %s437
      %p439 = pneg %p57
      %p440 = pneg %p54
      %s441 = smul.u32 %s27, 2
      %s442 = ssub.s32 %s441, 1
      %p443 = scmp.gt.s32.totalorder %s442, 0
      %s444 = scalar_select %p443, %s442, 0
      %s445 = smul.u32 2, %s444
      %p446 = scmp.lt.s32.totalorder %s26, 1
      %s447 = scalar_select %p446, %s26, 1
      %p448 = scmp.lt.s32.totalorder %s445, 7
      %s449 = scalar_select %p448, %s445, 7
      %s450 = smul.addr %s447, 8
      %s451 = sadd.s32 %s449, %s450
      %s452 = smul.addr %s451, 8
      %s453 = scalar_lea.vmem %s1, %s452
      %p454 = pneg %p93
      %p455 = pneg %p90
      %s456 = sadd.s32 %s27, 1
      %s457 = smul.u32 %s456, 2
      %p458 = scmp.lt.s32.totalorder %s457, 3
      %s459 = scalar_select %p458, %s457, 3
      %s460 = smul.u32 2, %s459
      %p461 = scmp.lt.s32.totalorder %s26, 1
      %s462 = scalar_select %p461, %s26, 1
      %p463 = scmp.lt.s32.totalorder %s460, 7
      %s464 = scalar_select %p463, %s460, 7
      %s465 = smul.addr %s462, 8
      %s466 = sadd.s32 %s464, %s465
      %s467 = smul.addr %s466, 8
      %s468 = scalar_lea.vmem %s2, %s467
      %p469 = pneg %p129
      %p470 = pneg %p126
      %p471 = pneg %p150
      %p472 = pneg %p147
      %p473 = pneg %p171
      %p474 = pneg %p168
      %p475 = pneg %p192
      %p476 = pneg %p189
      %p477 = pneg %p213
      %p478 = pneg %p210
      %p479 = pneg %p234
      %p480 = pneg %p231
      %p481 = pneg %p255
      %p482 = pneg %p252
      %p483 = pneg %p276
      %p484 = pneg %p273
      %p485 = pneg %p297
      %p486 = pneg %p294
      %p487 = pneg %p325
      %p488 = pneg %p322
      %s489 = smul.u32 4, %s27
      %p490 = scmp.lt.s32.totalorder %s26, 1
      %s491 = scalar_select %p490, %s26, 1
      %p492 = scmp.lt.s32.totalorder %s489, 7
      %s493 = scalar_select %p492, %s489, 7
      %s494 = smul.addr %s491, 8
      %s495 = sadd.s32 %s493, %s494
      %s496 = smul.addr %s495, 8
      %s497 = scalar_lea.vmem %s11, %s496
      %s498 = smul.u32 4, %s27
      %p499 = scmp.lt.s32.totalorder %s26, 1
      %s500 = scalar_select %p499, %s26, 1
      %p501 = scmp.lt.s32.totalorder %s498, 7
      %s502 = scalar_select %p501, %s498, 7
      %s503 = smul.addr %s500, 8
      %s504 = sadd.s32 %s502, %s503
      %s505 = smul.addr %s504, 8
      %s506 = scalar_lea.vmem %s0, %s505
      %s507 = smul.u32 4, %s27
      %s508 = smul.u32 %s27, 2
      %s509 = ssub.s32 %s508, 1
      %p510 = scmp.gt.s32.totalorder %s509, 0
      %s511 = scalar_select %p510, %s509, 0
      %s512 = smul.u32 2, %s511
      %p513 = scmp.lt.s32.totalorder %s26, 1
      %s514 = scalar_select %p513, %s26, 1
      %p515 = scmp.lt.s32.totalorder %s512, 7
      %s516 = scalar_select %p515, %s512, 7
      %s517 = smul.addr %s514, 8
      %s518 = sadd.s32 %s516, %s517
      %s519 = smul.addr %s518, 8
      %s520 = scalar_lea.vmem %s1, %s519
      %s521 = smul.u32 %s27, 2
      %s522 = ssub.s32 %s521, 1
      %p523 = scmp.gt.s32.totalorder %s522, 0
      %s524 = scalar_select %p523, %s522, 0
      %s525 = smul.u32 2, %s524
      %s526 = sadd.s32 %s27, 1
      %s527 = smul.u32 %s526, 2
      %p528 = scmp.lt.s32.totalorder %s527, 3
      %s529 = scalar_select %p528, %s527, 3
      %s530 = smul.u32 2, %s529
      %p531 = scmp.lt.s32.totalorder %s26, 1
      %s532 = scalar_select %p531, %s26, 1
      %p533 = scmp.lt.s32.totalorder %s530, 7
      %s534 = scalar_select %p533, %s530, 7
      %s535 = smul.addr %s532, 8
      %s536 = sadd.s32 %s534, %s535
      %s537 = smul.addr %s536, 8
      %s538 = scalar_lea.vmem %s2, %s537
      %s539 = sadd.s32 %s27, 1
      %s540 = smul.u32 %s539, 2
      %p541 = scmp.lt.s32.totalorder %s540, 3
      %s542 = scalar_select %p541, %s540, 3
      %s543 = smul.u32 2, %s542
      %s544 = smul.u32 4, %s27
      %p545 = scmp.lt.s32.totalorder %s26, 1
      %s546 = scalar_select %p545, %s26, 1
      %p547 = scmp.lt.s32.totalorder %s544, 7
      %s548 = scalar_select %p547, %s544, 7
      %s549 = smul.addr %s546, 8
      %s550 = sadd.s32 %s548, %s549
      %s551 = smul.addr %s550, 8
      %s552 = scalar_lea.vmem %s11, %s551
      %s553 = smul.u32 4, %s27
      %v554 = vld [vmem:[%s3] sm:$0xff]
      %v555 = vld [vmem:[%s3 + $0x8] sm:$0xff]
      %v556 = vld [vmem:[%s3 + $0x10] sm:$0xff]
      %v557 = vld [vmem:[%s3 + $0x18] sm:$0xff]
      %v558 = vld [vmem:[%s5] sm:$0xff]
      %v559 = vld [vmem:[%s5 + $0x8] sm:$0xff]
      %v560 = vld [vmem:[%s5 + $0x10] sm:$0xff]
      %v561 = vld [vmem:[%s5 + $0x18] sm:$0xff]
      %v562 = vld [vmem:[%s4] sm:$0x1]
      %v563 = vld [vmem:[%s6] sm:$0x1]
      %v564 = vld [vmem:[%s506] sm:$0xff]
      %v565 = vld [vmem:[%s506 + $0x8] sm:$0xff]
      %v566 = vld [vmem:[%s506 + $0x10] sm:$0xff]
      %v567 = vld [vmem:[%s506 + $0x18] sm:$0xff]
      %v569 = vperm.slane %v562, 0
      %vm571 = vcmask 261120
      %v573 = vsel %vm571, %v564, 0
      %v576 = vsel %vm571, %v565, 0
      %v579 = vsel %vm571, %v566, 0
      %v582 = vsel %vm571, %v567, 0
      %584 = vmatpush.msra.mxu0 0.0
      %585 = vmatpush.msra.mxu0 0.0
      %586 = vmatpush.msra.mxu0 0.0
      %587 = vmatpush.msra.mxu0 0.0
      %588 = vmatpush.msra.mxu0 0.0
      %589 = vmatpush.msra.mxu0 0.0
      %590 = vmatpush.msra.mxu0 0.0
      %591 = vmatpush.msra.mxu0 0.0
      %592 = vmatpush.msra.mxu0 0.0
      %593 = vmatpush.msra.mxu0 0.0
      %594 = vmatpush.msra.mxu0 0.0
      %595 = vmatpush.msra.mxu0 0.0
      %596 = vmatpush.msra.mxu0 %v557
      %597 = vmatpush.msra.mxu0 %v556
      %598 = vmatpush.msra.mxu0 %v555
      %599 = vmatpush.msra.mxu0 %v554
      %600 = vmatmul.f32.gmra.mxu0 %v573
      %v601 = vpop.f32.mrf.mxu0
      %v602 = vadd.f32 %v569, %v601
      %603 = vmatmul.f32.gmra.mxu0 %v576
      %v604 = vpop.f32.mrf.mxu0
      %v605 = vadd.f32 %v569, %v604
      %606 = vmatmul.f32.gmra.mxu0 %v579
      %v607 = vpop.f32.mrf.mxu0
      %v608 = vadd.f32 %v569, %v607
      %609 = vmatmul.f32.gmra.mxu0 %v582
      %v610 = vpop.f32.mrf.mxu0
      %v611 = vadd.f32 %v569, %v610
      %612 = vdwg.mxu0
      %v614 = vperm.slane %v563, 0
      %616 = vmatpush.msra.mxu0 0.0
      %617 = vmatpush.msra.mxu0 0.0
      %618 = vmatpush.msra.mxu0 0.0
      %619 = vmatpush.msra.mxu0 0.0
      %620 = vmatpush.msra.mxu0 0.0
      %621 = vmatpush.msra.mxu0 0.0
      %622 = vmatpush.msra.mxu0 0.0
      %623 = vmatpush.msra.mxu0 0.0
      %624 = vmatpush.msra.mxu0 0.0
      %625 = vmatpush.msra.mxu0 0.0
      %626 = vmatpush.msra.mxu0 0.0
      %627 = vmatpush.msra.mxu0 0.0
      %628 = vmatpush.msra.mxu0 %v561
      %629 = vmatpush.msra.mxu0 %v560
      %630 = vmatpush.msra.mxu0 %v559
      %631 = vmatpush.msra.mxu0 %v558
      %632 = vmatmul.f32.gmra.mxu0 %v573
      %v633 = vpop.f32.mrf.mxu0
      %v634 = vadd.f32 %v614, %v633
      %635 = vmatmul.f32.gmra.mxu0 %v576
      %v636 = vpop.f32.mrf.mxu0
      %v637 = vadd.f32 %v614, %v636
      %638 = vmatmul.f32.gmra.mxu0 %v579
      %v639 = vpop.f32.mrf.mxu0
      %v640 = vadd.f32 %v614, %v639
      %641 = vmatmul.f32.gmra.mxu0 %v582
      %v642 = vpop.f32.mrf.mxu0
      %v643 = vadd.f32 %v614, %v642
      %644 = vdwg.mxu0
      %v645 = vxor.u32 %v634, 2147483648
      %v646 = vxor.u32 %v637, 2147483648
      %v647 = vxor.u32 %v640, 2147483648
      %v648 = vxor.u32 %v643, 2147483648
      %v649 = vmul.f32 %v645, 1.442695
      %v650 = vpow.pop %v649
      %v651 = vmul.f32 %v646, 1.442695
      %v652 = vpow.pop %v651
      %v653 = vmul.f32 %v647, 1.442695
      %v654 = vpow.pop %v653
      %v655 = vmul.f32 %v648, 1.442695
      %v656 = vpow.pop %v655
      %v657 = vadd.f32 %v650, 1.0
      %v658 = vadd.f32 %v652, 1.0
      %v659 = vadd.f32 %v654, 1.0
      %v660 = vadd.f32 %v656, 1.0
      %v661 = vrcp.pop %v657
      %v662 = vmul.f32 %v657, %v661
      %v663 = vsub.f32 1.0, %v662
      %v664 = vmul.f32 %v661, %v663
      %v665 = vadd.f32 %v661, %v664
      %vm666 = vweird.f32 %v657
      %vm667 = vweird.f32 %v661
      %vm668 = vmor %vm666, %vm667
      %v669 = vsel %vm668, %v661, %v665
      %v670 = vand.u32 2147483647, %v657
      %vm671 = vcmp.eq.f32.partialorder %v670, 8.507059e+37
      %v672 = vand.u32 %v657, 2147483648
      %v673 = vor.u32 1.1754944e-38, %v672
      %v674 = vsel %vm671, %v673, %v669
      %v675 = vmul.f32 1.0, %v674
      %v676 = vrcp.pop %v658
      %v677 = vmul.f32 %v658, %v676
      %v678 = vsub.f32 1.0, %v677
      %v679 = vmul.f32 %v676, %v678
      %v680 = vadd.f32 %v676, %v679
      %vm681 = vweird.f32 %v658
      %vm682 = vweird.f32 %v676
      %vm683 = vmor %vm681, %vm682
      %v684 = vsel %vm683, %v676, %v680
      %v685 = vand.u32 2147483647, %v658
      %vm686 = vcmp.eq.f32.partialorder %v685, 8.507059e+37
      %v687 = vand.u32 %v658, 2147483648
      %v688 = vor.u32 1.1754944e-38, %v687
      %v689 = vsel %vm686, %v688, %v684
      %v690 = vmul.f32 1.0, %v689
      %v691 = vrcp.pop %v659
      %v692 = vmul.f32 %v659, %v691
      %v693 = vsub.f32 1.0, %v692
      %v694 = vmul.f32 %v691, %v693
      %v695 = vadd.f32 %v691, %v694
      %vm696 = vweird.f32 %v659
      %vm697 = vweird.f32 %v691
      %vm698 = vmor %vm696, %vm697
      %v699 = vsel %vm698, %v691, %v695
      %v700 = vand.u32 2147483647, %v659
      %vm701 = vcmp.eq.f32.partialorder %v700, 8.507059e+37
      %v702 = vand.u32 %v659, 2147483648
      %v703 = vor.u32 1.1754944e-38, %v702
      %v704 = vsel %vm701, %v703, %v699
      %v705 = vmul.f32 1.0, %v704
      %v706 = vrcp.pop %v660
      %v707 = vmul.f32 %v660, %v706
      %v708 = vsub.f32 1.0, %v707
      %v709 = vmul.f32 %v706, %v708
      %v710 = vadd.f32 %v706, %v709
      %vm711 = vweird.f32 %v660
      %vm712 = vweird.f32 %v706
      %vm713 = vmor %vm711, %vm712
      %v714 = vsel %vm713, %v706, %v710
      %v715 = vand.u32 2147483647, %v660
      %vm716 = vcmp.eq.f32.partialorder %v715, 8.507059e+37
      %v717 = vand.u32 %v660, 2147483648
      %v718 = vor.u32 1.1754944e-38, %v717
      %v719 = vsel %vm716, %v718, %v714
      %v720 = vmul.f32 1.0, %v719
      %v721 = vmul.f32 %v602, %v675
      %v722 = vmul.f32 %v605, %v690
      %v723 = vmul.f32 %v608, %v705
      %v724 = vmul.f32 %v611, %v720
      %s725 = smul.u32 %s27, 32
      %v726 = vlaneseq
      %v727 = vshrl.u32 %v726, 7
      %v728 = vadd.s32 %v727, 8
      %v729 = vadd.s32 %v727, 16
      %v730 = vadd.s32 %v727, 24
      %v731 = vstv %s725
      %v732 = vadd.s32 %v731, %v727
      %v733 = vadd.s32 %v731, %v728
      %v734 = vadd.s32 %v731, %v729
      %v735 = vadd.s32 %v731, %v730
      %vm736 = vcmp.lt.s32.totalorder %v732, 60
      %vm737 = vcmp.lt.s32.totalorder %v733, 60
      %vm738 = vcmp.lt.s32.totalorder %v734, 60
      %vm739 = vcmp.lt.s32.totalorder %v735, 60
      %v740 = vsel %vm736, 1, 0
      %v741 = vsel %vm737, 1, 0
      %v742 = vsel %vm738, 1, 0
      %v743 = vsel %vm739, 1, 0
      %vm744 = vcmp.eq.s32.totalorder %v740, 1
      %vm745 = vcmp.eq.s32.totalorder %v741, 1
      %vm746 = vcmp.eq.s32.totalorder %v742, 1
      %vm747 = vcmp.eq.s32.totalorder %v743, 1
      %v748 = vsel %vm744, %v721, 0.0
      %v749 = vsel %vm745, %v722, 0.0
      %v750 = vsel %vm746, %v723, 0.0
      %v751 = vsel %vm747, %v724, 0.0
      %vm752 = vcmask 523264
      %753 = vst.msk [vmem:[#allocation2 + $0x10] sm:$0xff] %vm752, %v748
      %754 = vst.msk [vmem:[#allocation2 + $0x18] sm:$0xff] %vm752, %v749
      %755 = vst.msk [vmem:[#allocation2 + $0x20] sm:$0xff] %vm752, %v750
      %756 = vst.msk [vmem:[#allocation2 + $0x28] sm:$0xff] %vm752, %v751
      %p757 = scmp.gt.s32.totalorder %s27, 0
      %s758 = scalar_select %p757, 1, 0
      %s759 = scvt.s32.f32 %s758
      %v760 = vld [vmem:[%s520] sm:$0xff]
      %v761 = vld [vmem:[%s520 + $0x8] sm:$0xff]
      %v763 = vsel %vm571, %v760, 0
      %v766 = vsel %vm571, %v761, 0
      %768 = vmatpush.msra.mxu0 0.0
      %769 = vmatpush.msra.mxu0 0.0
      %770 = vmatpush.msra.mxu0 0.0
      %771 = vmatpush.msra.mxu0 0.0
      %772 = vmatpush.msra.mxu0 0.0
      %773 = vmatpush.msra.mxu0 0.0
      %774 = vmatpush.msra.mxu0 0.0
      %775 = vmatpush.msra.mxu0 0.0
      %776 = vmatpush.msra.mxu0 0.0
      %777 = vmatpush.msra.mxu0 0.0
      %778 = vmatpush.msra.mxu0 0.0
      %779 = vmatpush.msra.mxu0 0.0
      %780 = vmatpush.msra.mxu0 %v557
      %781 = vmatpush.msra.mxu0 %v556
      %782 = vmatpush.msra.mxu0 %v555
      %783 = vmatpush.msra.mxu0 %v554
      %784 = vmatmul.f32.gmra.mxu0 %v763
      %v785 = vpop.f32.mrf.mxu0
      %v786 = vadd.f32 %v569, %v785
      %787 = vmatmul.f32.gmra.mxu0 %v766
      %v788 = vpop.f32.mrf.mxu0
      %v789 = vadd.f32 %v569, %v788
      %790 = vdwg.mxu0
      %791 = vmatpush.msra.mxu0 0.0
      %792 = vmatpush.msra.mxu0 0.0
      %793 = vmatpush.msra.mxu0 0.0
      %794 = vmatpush.msra.mxu0 0.0
      %795 = vmatpush.msra.mxu0 0.0
      %796 = vmatpush.msra.mxu0 0.0
      %797 = vmatpush.msra.mxu0 0.0
      %798 = vmatpush.msra.mxu0 0.0
      %799 = vmatpush.msra.mxu0 0.0
      %800 = vmatpush.msra.mxu0 0.0
      %801 = vmatpush.msra.mxu0 0.0
      %802 = vmatpush.msra.mxu0 0.0
      %803 = vmatpush.msra.mxu0 %v561
      %804 = vmatpush.msra.mxu0 %v560
      %805 = vmatpush.msra.mxu0 %v559
      %806 = vmatpush.msra.mxu0 %v558
      %807 = vmatmul.f32.gmra.mxu0 %v763
      %v808 = vpop.f32.mrf.mxu0
      %v809 = vadd.f32 %v614, %v808
      %810 = vmatmul.f32.gmra.mxu0 %v766
      %v811 = vpop.f32.mrf.mxu0
      %v812 = vadd.f32 %v614, %v811
      %813 = vdwg.mxu0
      %v814 = vxor.u32 %v809, 2147483648
      %v815 = vxor.u32 %v812, 2147483648
      %v816 = vmul.f32 %v814, 1.442695
      %v817 = vpow.pop %v816
      %v818 = vmul.f32 %v815, 1.442695
      %v819 = vpow.pop %v818
      %v820 = vadd.f32 %v817, 1.0
      %v821 = vadd.f32 %v819, 1.0
      %v822 = vrcp.pop %v820
      %v823 = vmul.f32 %v820, %v822
      %v824 = vsub.f32 1.0, %v823
      %v825 = vmul.f32 %v822, %v824
      %v826 = vadd.f32 %v822, %v825
      %vm827 = vweird.f32 %v820
      %vm828 = vweird.f32 %v822
      %vm829 = vmor %vm827, %vm828
      %v830 = vsel %vm829, %v822, %v826
      %v831 = vand.u32 2147483647, %v820
      %vm832 = vcmp.eq.f32.partialorder %v831, 8.507059e+37
      %v833 = vand.u32 %v820, 2147483648
      %v834 = vor.u32 1.1754944e-38, %v833
      %v835 = vsel %vm832, %v834, %v830
      %v836 = vmul.f32 1.0, %v835
      %v837 = vrcp.pop %v821
      %v838 = vmul.f32 %v821, %v837
      %v839 = vsub.f32 1.0, %v838
      %v840 = vmul.f32 %v837, %v839
      %v841 = vadd.f32 %v837, %v840
      %vm842 = vweird.f32 %v821
      %vm843 = vweird.f32 %v837
      %vm844 = vmor %vm842, %vm843
      %v845 = vsel %vm844, %v837, %v841
      %v846 = vand.u32 2147483647, %v821
      %vm847 = vcmp.eq.f32.partialorder %v846, 8.507059e+37
      %v848 = vand.u32 %v821, 2147483648
      %v849 = vor.u32 1.1754944e-38, %v848
      %v850 = vsel %vm847, %v849, %v845
      %v851 = vmul.f32 1.0, %v850
      %v852 = vmul.f32 %v786, %v836
      %v853 = vmul.f32 %v789, %v851
      %v854 = vstv %s759
      %v855 = vmul.f32 %v852, %v854
      %v856 = vmul.f32 %v853, %v854
      %857 = vst.msk [vmem:[#allocation2] sm:$0xff] %vm752, %v855
      %858 = vst.msk [vmem:[#allocation2 + $0x8] sm:$0xff] %vm752, %v856
      %s859 = sadd.s32 %s27, 1
      %s860 = smul.u32 %s859, 32
      %v861 = vstv %s860
      %v862 = vadd.s32 %v861, %v727
      %v863 = vadd.s32 %v861, %v728
      %vm864 = vcmp.lt.s32.totalorder %v862, 60
      %vm865 = vcmp.lt.s32.totalorder %v863, 60
      %v866 = vld [vmem:[%s538] sm:$0xff]
      %v867 = vld [vmem:[%s538 + $0x8] sm:$0xff]
      %v869 = vsel %vm571, %v866, 0
      %v872 = vsel %vm571, %v867, 0
      %874 = vmatpush.msra.mxu0 0.0
      %875 = vmatpush.msra.mxu0 0.0
      %876 = vmatpush.msra.mxu0 0.0
      %877 = vmatpush.msra.mxu0 0.0
      %878 = vmatpush.msra.mxu0 0.0
      %879 = vmatpush.msra.mxu0 0.0
      %880 = vmatpush.msra.mxu0 0.0
      %881 = vmatpush.msra.mxu0 0.0
      %882 = vmatpush.msra.mxu0 0.0
      %883 = vmatpush.msra.mxu0 0.0
      %884 = vmatpush.msra.mxu0 0.0
      %885 = vmatpush.msra.mxu0 0.0
      %886 = vmatpush.msra.mxu0 %v557
      %887 = vmatpush.msra.mxu0 %v556
      %888 = vmatpush.msra.mxu0 %v555
      %889 = vmatpush.msra.mxu0 %v554
      %890 = vmatmul.f32.gmra.mxu0 %v869
      %v891 = vpop.f32.mrf.mxu0
      %v892 = vadd.f32 %v569, %v891
      %893 = vmatmul.f32.gmra.mxu0 %v872
      %v894 = vpop.f32.mrf.mxu0
      %v895 = vadd.f32 %v569, %v894
      %896 = vdwg.mxu0
      %897 = vmatpush.msra.mxu0 0.0
      %898 = vmatpush.msra.mxu0 0.0
      %899 = vmatpush.msra.mxu0 0.0
      %900 = vmatpush.msra.mxu0 0.0
      %901 = vmatpush.msra.mxu0 0.0
      %902 = vmatpush.msra.mxu0 0.0
      %903 = vmatpush.msra.mxu0 0.0
      %904 = vmatpush.msra.mxu0 0.0
      %905 = vmatpush.msra.mxu0 0.0
      %906 = vmatpush.msra.mxu0 0.0
      %907 = vmatpush.msra.mxu0 0.0
      %908 = vmatpush.msra.mxu0 0.0
      %909 = vmatpush.msra.mxu0 %v561
      %910 = vmatpush.msra.mxu0 %v560
      %911 = vmatpush.msra.mxu0 %v559
      %912 = vmatpush.msra.mxu0 %v558
      %913 = vmatmul.f32.gmra.mxu0 %v869
      %v914 = vpop.f32.mrf.mxu0
      %v915 = vadd.f32 %v614, %v914
      %916 = vmatmul.f32.gmra.mxu0 %v872
      %v917 = vpop.f32.mrf.mxu0
      %v918 = vadd.f32 %v614, %v917
      %919 = vdwg.mxu0
      %v920 = vxor.u32 %v915, 2147483648
      %v921 = vxor.u32 %v918, 2147483648
      %v922 = vmul.f32 %v920, 1.442695
      %v923 = vpow.pop %v922
      %v924 = vmul.f32 %v921, 1.442695
      %v925 = vpow.pop %v924
      %v926 = vadd.f32 %v923, 1.0
      %v927 = vadd.f32 %v925, 1.0
      %v928 = vrcp.pop %v926
      %v929 = vmul.f32 %v926, %v928
      %v930 = vsub.f32 1.0, %v929
      %v931 = vmul.f32 %v928, %v930
      %v932 = vadd.f32 %v928, %v931
      %vm933 = vweird.f32 %v926
      %vm934 = vweird.f32 %v928
      %vm935 = vmor %vm933, %vm934
      %v936 = vsel %vm935, %v928, %v932
      %v937 = vand.u32 2147483647, %v926
      %vm938 = vcmp.eq.f32.partialorder %v937, 8.507059e+37
      %v939 = vand.u32 %v926, 2147483648
      %v940 = vor.u32 1.1754944e-38, %v939
      %v941 = vsel %vm938, %v940, %v936
      %v942 = vmul.f32 1.0, %v941
      %v943 = vrcp.pop %v927
      %v944 = vmul.f32 %v927, %v943
      %v945 = vsub.f32 1.0, %v944
      %v946 = vmul.f32 %v943, %v945
      %v947 = vadd.f32 %v943, %v946
      %vm948 = vweird.f32 %v927
      %vm949 = vweird.f32 %v943
      %vm950 = vmor %vm948, %vm949
      %v951 = vsel %vm950, %v943, %v947
      %v952 = vand.u32 2147483647, %v927
      %vm953 = vcmp.eq.f32.partialorder %v952, 8.507059e+37
      %v954 = vand.u32 %v927, 2147483648
      %v955 = vor.u32 1.1754944e-38, %v954
      %v956 = vsel %vm953, %v955, %v951
      %v957 = vmul.f32 1.0, %v956
      %v958 = vmul.f32 %v892, %v942
      %v959 = vmul.f32 %v895, %v957
      %v960 = vsel %vm864, 1, 0
      %v961 = vsel %vm865, 1, 0
      %vm962 = vcmp.eq.s32.totalorder %v960, 1
      %vm963 = vcmp.eq.s32.totalorder %v961, 1
      %v964 = vsel %vm962, %v958, 0.0
      %v965 = vsel %vm963, %v959, 0.0
      %966 = vst.msk [vmem:[#allocation2 + $0x30] sm:$0xff] %vm752, %v964
      %967 = vst.msk [vmem:[#allocation2 + $0x38] sm:$0xff] %vm752, %v965
      %v968 = vld [vmem:[#allocation2 + $0x1] sm:$0xff]
      %v969 = vld [vmem:[#allocation2 + $0x9] sm:$0xff]
      %v970 = vld [vmem:[#allocation2 + $0x11] sm:$0xff]
      %v971 = vld [vmem:[#allocation2 + $0x19] sm:$0xff]
      %v972 = vld [vmem:[%s7] sm:$0x1]
      %v973 = vperm.slane %v972, 0
      %v974 = vmul.f32 %v968, %v973
      %v975 = vmul.f32 %v969, %v973
      %v976 = vmul.f32 %v970, %v973
      %v977 = vmul.f32 %v971, %v973
      %v978 = vadd.f32 %v974, 0.0
      %v979 = vadd.f32 %v975, 0.0
      %v980 = vadd.f32 %v976, 0.0
      %v981 = vadd.f32 %v977, 0.0
      %v982 = vld [vmem:[#allocation2 + $0x2] sm:$0xff]
      %v983 = vld [vmem:[#allocation2 + $0xa] sm:$0xff]
      %v984 = vld [vmem:[#allocation2 + $0x12] sm:$0xff]
      %v985 = vld [vmem:[#allocation2 + $0x1a] sm:$0xff]
      %v986 = vld [vmem:[%s7 + $0x1] sm:$0x1]
      %v987 = vperm.slane %v986, 0
      %v988 = vmul.f32 %v982, %v987
      %v989 = vmul.f32 %v983, %v987
      %v990 = vmul.f32 %v984, %v987
      %v991 = vmul.f32 %v985, %v987
      %v992 = vadd.f32 %v988, 0.0
      %v993 = vadd.f32 %v989, 0.0
      %v994 = vadd.f32 %v990, 0.0
      %v995 = vadd.f32 %v991, 0.0
      %v996 = vld [vmem:[#allocation2 + $0x3] sm:$0xff]
      %v997 = vld [vmem:[#allocation2 + $0xb] sm:$0xff]
      %v998 = vld [vmem:[#allocation2 + $0x13] sm:$0xff]
      %v999 = vld [vmem:[#allocation2 + $0x1b] sm:$0xff]
      %v1000 = vld [vmem:[%s7 + $0x2] sm:$0x1]
      %v1001 = vperm.slane %v1000, 0
      %v1002 = vmul.f32 %v996, %v1001
      %v1003 = vmul.f32 %v997, %v1001
      %v1004 = vmul.f32 %v998, %v1001
      %v1005 = vmul.f32 %v999, %v1001
      %v1006 = vadd.f32 %v1002, 0.0
      %v1007 = vadd.f32 %v1003, 0.0
      %v1008 = vadd.f32 %v1004, 0.0
      %v1009 = vadd.f32 %v1005, 0.0
      %v1010 = vld [vmem:[#allocation2 + $0x4] sm:$0xff]
      %v1011 = vld [vmem:[#allocation2 + $0xc] sm:$0xff]
      %v1012 = vld [vmem:[#allocation2 + $0x14] sm:$0xff]
      %v1013 = vld [vmem:[#allocation2 + $0x1c] sm:$0xff]
      %v1014 = vld [vmem:[%s7 + $0x3] sm:$0x1]
      %v1015 = vperm.slane %v1014, 0
      %v1016 = vmul.f32 %v1010, %v1015
      %v1017 = vmul.f32 %v1011, %v1015
      %v1018 = vmul.f32 %v1012, %v1015
      %v1019 = vmul.f32 %v1013, %v1015
      %v1020 = vadd.f32 %v1016, 0.0
      %v1021 = vadd.f32 %v1017, 0.0
      %v1022 = vadd.f32 %v1018, 0.0
      %v1023 = vadd.f32 %v1019, 0.0
      %v1024 = vld [vmem:[#allocation2 + $0x5] sm:$0xff]
      %v1025 = vld [vmem:[#allocation2 + $0xd] sm:$0xff]
      %v1026 = vld [vmem:[#allocation2 + $0x15] sm:$0xff]
      %v1027 = vld [vmem:[#allocation2 + $0x1d] sm:$0xff]
      %v1028 = vld [vmem:[%s7 + $0x4] sm:$0x1]
      %v1029 = vperm.slane %v1028, 0
      %v1030 = vmul.f32 %v1024, %v1029
      %v1031 = vmul.f32 %v1025, %v1029
      %v1032 = vmul.f32 %v1026, %v1029
      %v1033 = vmul.f32 %v1027, %v1029
      %v1034 = vadd.f32 %v978, %v1030
      %v1035 = vadd.f32 %v979, %v1031
      %v1036 = vadd.f32 %v980, %v1032
      %v1037 = vadd.f32 %v981, %v1033
      %v1038 = vld [vmem:[#allocation2 + $0x6] sm:$0xff]
      %v1039 = vld [vmem:[#allocation2 + $0xe] sm:$0xff]
      %v1040 = vld [vmem:[#allocation2 + $0x16] sm:$0xff]
      %v1041 = vld [vmem:[#allocation2 + $0x1e] sm:$0xff]
      %v1042 = vld [vmem:[%s7 + $0x5] sm:$0x1]
      %v1043 = vperm.slane %v1042, 0
      %v1044 = vmul.f32 %v1038, %v1043
      %v1045 = vmul.f32 %v1039, %v1043
      %v1046 = vmul.f32 %v1040, %v1043
      %v1047 = vmul.f32 %v1041, %v1043
      %v1048 = vadd.f32 %v992, %v1044
      %v1049 = vadd.f32 %v993, %v1045
      %v1050 = vadd.f32 %v994, %v1046
      %v1051 = vadd.f32 %v995, %v1047
      %v1052 = vld [vmem:[#allocation2 + $0x7] sm:$0xff]
      %v1053 = vld [vmem:[#allocation2 + $0xf] sm:$0xff]
      %v1054 = vld [vmem:[#allocation2 + $0x17] sm:$0xff]
      %v1055 = vld [vmem:[#allocation2 + $0x1f] sm:$0xff]
      %v1056 = vld [vmem:[%s7 + $0x6] sm:$0x1]
      %v1057 = vperm.slane %v1056, 0
      %v1058 = vmul.f32 %v1052, %v1057
      %v1059 = vmul.f32 %v1053, %v1057
      %v1060 = vmul.f32 %v1054, %v1057
      %v1061 = vmul.f32 %v1055, %v1057
      %v1062 = vadd.f32 %v1006, %v1058
      %v1063 = vadd.f32 %v1007, %v1059
      %v1064 = vadd.f32 %v1008, %v1060
      %v1065 = vadd.f32 %v1009, %v1061
      %v1066 = vld [vmem:[#allocation2 + $0x8] sm:$0xff]
      %v1067 = vld [vmem:[#allocation2 + $0x10] sm:$0xff]
      %v1068 = vld [vmem:[#allocation2 + $0x18] sm:$0xff]
      %v1069 = vld [vmem:[#allocation2 + $0x20] sm:$0xff]
      %v1070 = vld [vmem:[%s7 + $0x7] sm:$0x1]
      %v1071 = vperm.slane %v1070, 0
      %v1072 = vmul.f32 %v1066, %v1071
      %v1073 = vmul.f32 %v1067, %v1071
      %v1074 = vmul.f32 %v1068, %v1071
      %v1075 = vmul.f32 %v1069, %v1071
      %v1076 = vadd.f32 %v1020, %v1072
      %v1077 = vadd.f32 %v1021, %v1073
      %v1078 = vadd.f32 %v1022, %v1074
      %v1079 = vadd.f32 %v1023, %v1075
      %v1080 = vld [vmem:[#allocation2 + $0x21] sm:$0xff]
      %v1081 = vld [vmem:[%s7 + $0x8] sm:$0x1]
      %v1082 = vperm.slane %v1081, 0
      %v1083 = vmul.f32 %v969, %v1082
      %v1084 = vmul.f32 %v970, %v1082
      %v1085 = vmul.f32 %v971, %v1082
      %v1086 = vmul.f32 %v1080, %v1082
      %v1087 = vadd.f32 %v1034, %v1083
      %v1088 = vadd.f32 %v1035, %v1084
      %v1089 = vadd.f32 %v1036, %v1085
      %v1090 = vadd.f32 %v1037, %v1086
      %v1091 = vld [vmem:[#allocation2 + $0x22] sm:$0xff]
      %v1092 = vld [vmem:[%s7 + $0x9] sm:$0x1]
      %v1093 = vperm.slane %v1092, 0
      %v1094 = vmul.f32 %v983, %v1093
      %v1095 = vmul.f32 %v984, %v1093
      %v1096 = vmul.f32 %v985, %v1093
      %v1097 = vmul.f32 %v1091, %v1093
      %v1098 = vadd.f32 %v1048, %v1094
      %v1099 = vadd.f32 %v1049, %v1095
      %v1100 = vadd.f32 %v1050, %v1096
      %v1101 = vadd.f32 %v1051, %v1097
      %v1102 = vld [vmem:[#allocation2 + $0x23] sm:$0xff]
      %v1103 = vld [vmem:[%s7 + $0xa] sm:$0x1]
      %v1104 = vperm.slane %v1103, 0
      %v1105 = vmul.f32 %v997, %v1104
      %v1106 = vmul.f32 %v998, %v1104
      %v1107 = vmul.f32 %v999, %v1104
      %v1108 = vmul.f32 %v1102, %v1104
      %v1109 = vadd.f32 %v1062, %v1105
      %v1110 = vadd.f32 %v1063, %v1106
      %v1111 = vadd.f32 %v1064, %v1107
      %v1112 = vadd.f32 %v1065, %v1108
      %v1113 = vld [vmem:[#allocation2 + $0x24] sm:$0xff]
      %v1114 = vld [vmem:[%s7 + $0xb] sm:$0x1]
      %v1115 = vperm.slane %v1114, 0
      %v1116 = vmul.f32 %v1011, %v1115
      %v1117 = vmul.f32 %v1012, %v1115
      %v1118 = vmul.f32 %v1013, %v1115
      %v1119 = vmul.f32 %v1113, %v1115
      %v1120 = vadd.f32 %v1076, %v1116
      %v1121 = vadd.f32 %v1077, %v1117
      %v1122 = vadd.f32 %v1078, %v1118
      %v1123 = vadd.f32 %v1079, %v1119
      %v1124 = vld [vmem:[#allocation2 + $0x25] sm:$0xff]
      %v1125 = vld [vmem:[%s7 + $0xc] sm:$0x1]
      %v1126 = vperm.slane %v1125, 0
      %v1127 = vmul.f32 %v1025, %v1126
      %v1128 = vmul.f32 %v1026, %v1126
      %v1129 = vmul.f32 %v1027, %v1126
      %v1130 = vmul.f32 %v1124, %v1126
      %v1131 = vadd.f32 %v1087, %v1127
      %v1132 = vadd.f32 %v1088, %v1128
      %v1133 = vadd.f32 %v1089, %v1129
      %v1134 = vadd.f32 %v1090, %v1130
      %v1135 = vld [vmem:[#allocation2 + $0x26] sm:$0xff]
      %v1136 = vld [vmem:[%s7 + $0xd] sm:$0x1]
      %v1137 = vperm.slane %v1136, 0
      %v1138 = vmul.f32 %v1039, %v1137
      %v1139 = vmul.f32 %v1040, %v1137
      %v1140 = vmul.f32 %v1041, %v1137
      %v1141 = vmul.f32 %v1135, %v1137
      %v1142 = vadd.f32 %v1098, %v1138
      %v1143 = vadd.f32 %v1099, %v1139
      %v1144 = vadd.f32 %v1100, %v1140
      %v1145 = vadd.f32 %v1101, %v1141
      %v1146 = vld [vmem:[#allocation2 + $0x27] sm:$0xff]
      %v1147 = vld [vmem:[%s7 + $0xe] sm:$0x1]
      %v1148 = vperm.slane %v1147, 0
      %v1149 = vmul.f32 %v1053, %v1148
      %v1150 = vmul.f32 %v1054, %v1148
      %v1151 = vmul.f32 %v1055, %v1148
      %v1152 = vmul.f32 %v1146, %v1148
      %v1153 = vadd.f32 %v1109, %v1149
      %v1154 = vadd.f32 %v1110, %v1150
      %v1155 = vadd.f32 %v1111, %v1151
      %v1156 = vadd.f32 %v1112, %v1152
      %v1157 = vld [vmem:[#allocation2 + $0x28] sm:$0xff]
      %v1158 = vld [vmem:[%s7 + $0xf] sm:$0x1]
      %v1159 = vperm.slane %v1158, 0
      %v1160 = vmul.f32 %v1067, %v1159
      %v1161 = vmul.f32 %v1068, %v1159
      %v1162 = vmul.f32 %v1069, %v1159
      %v1163 = vmul.f32 %v1157, %v1159
      %v1164 = vadd.f32 %v1120, %v1160
      %v1165 = vadd.f32 %v1121, %v1161
      %v1166 = vadd.f32 %v1122, %v1162
      %v1167 = vadd.f32 %v1123, %v1163
      %v1168 = vld [vmem:[#allocation2 + $0x29] sm:$0xff]
      %v1169 = vld [vmem:[%s7 + $0x10] sm:$0x1]
      %v1170 = vperm.slane %v1169, 0
      %v1171 = vmul.f32 %v970, %v1170
      %v1172 = vmul.f32 %v971, %v1170
      %v1173 = vmul.f32 %v1080, %v1170
      %v1174 = vmul.f32 %v1168, %v1170
      %v1175 = vadd.f32 %v1131, %v1171
      %v1176 = vadd.f32 %v1132, %v1172
      %v1177 = vadd.f32 %v1133, %v1173
      %v1178 = vadd.f32 %v1134, %v1174
      %v1179 = vld [vmem:[#allocation2 + $0x2a] sm:$0xff]
      %v1180 = vld [vmem:[%s7 + $0x11] sm:$0x1]
      %v1181 = vperm.slane %v1180, 0
      %v1182 = vmul.f32 %v984, %v1181
      %v1183 = vmul.f32 %v985, %v1181
      %v1184 = vmul.f32 %v1091, %v1181
      %v1185 = vmul.f32 %v1179, %v1181
      %v1186 = vadd.f32 %v1142, %v1182
      %v1187 = vadd.f32 %v1143, %v1183
      %v1188 = vadd.f32 %v1144, %v1184
      %v1189 = vadd.f32 %v1145, %v1185
      %v1190 = vld [vmem:[#allocation2 + $0x2b] sm:$0xff]
      %v1191 = vld [vmem:[%s7 + $0x12] sm:$0x1]
      %v1192 = vperm.slane %v1191, 0
      %v1193 = vmul.f32 %v998, %v1192
      %v1194 = vmul.f32 %v999, %v1192
      %v1195 = vmul.f32 %v1102, %v1192
      %v1196 = vmul.f32 %v1190, %v1192
      %v1197 = vadd.f32 %v1153, %v1193
      %v1198 = vadd.f32 %v1154, %v1194
      %v1199 = vadd.f32 %v1155, %v1195
      %v1200 = vadd.f32 %v1156, %v1196
      %v1201 = vld [vmem:[#allocation2 + $0x2c] sm:$0xff]
      %v1202 = vld [vmem:[%s7 + $0x13] sm:$0x1]
      %v1203 = vperm.slane %v1202, 0
      %v1204 = vmul.f32 %v1012, %v1203
      %v1205 = vmul.f32 %v1013, %v1203
      %v1206 = vmul.f32 %v1113, %v1203
      %v1207 = vmul.f32 %v1201, %v1203
      %v1208 = vadd.f32 %v1164, %v1204
      %v1209 = vadd.f32 %v1165, %v1205
      %v1210 = vadd.f32 %v1166, %v1206
      %v1211 = vadd.f32 %v1167, %v1207
      %v1212 = vld [vmem:[#allocation2 + $0x2d] sm:$0xff]
      %v1213 = vld [vmem:[%s7 + $0x14] sm:$0x1]
      %v1214 = vperm.slane %v1213, 0
      %v1215 = vmul.f32 %v1026, %v1214
      %v1216 = vmul.f32 %v1027, %v1214
      %v1217 = vmul.f32 %v1124, %v1214
      %v1218 = vmul.f32 %v1212, %v1214
      %v1219 = vadd.f32 %v1175, %v1215
      %v1220 = vadd.f32 %v1176, %v1216
      %v1221 = vadd.f32 %v1177, %v1217
      %v1222 = vadd.f32 %v1178, %v1218
      %v1223 = vld [vmem:[#allocation2 + $0x2e] sm:$0xff]
      %v1224 = vld [vmem:[%s7 + $0x15] sm:$0x1]
      %v1225 = vperm.slane %v1224, 0
      %v1226 = vmul.f32 %v1040, %v1225
      %v1227 = vmul.f32 %v1041, %v1225
      %v1228 = vmul.f32 %v1135, %v1225
      %v1229 = vmul.f32 %v1223, %v1225
      %v1230 = vadd.f32 %v1186, %v1226
      %v1231 = vadd.f32 %v1187, %v1227
      %v1232 = vadd.f32 %v1188, %v1228
      %v1233 = vadd.f32 %v1189, %v1229
      %v1234 = vld [vmem:[#allocation2 + $0x2f] sm:$0xff]
      %v1235 = vld [vmem:[%s7 + $0x16] sm:$0x1]
      %v1236 = vperm.slane %v1235, 0
      %v1237 = vmul.f32 %v1054, %v1236
      %v1238 = vmul.f32 %v1055, %v1236
      %v1239 = vmul.f32 %v1146, %v1236
      %v1240 = vmul.f32 %v1234, %v1236
      %v1241 = vadd.f32 %v1197, %v1237
      %v1242 = vadd.f32 %v1198, %v1238
      %v1243 = vadd.f32 %v1199, %v1239
      %v1244 = vadd.f32 %v1200, %v1240
      %v1245 = vld [vmem:[#allocation2 + $0x30] sm:$0xff]
      %v1246 = vld [vmem:[%s7 + $0x17] sm:$0x1]
      %v1247 = vperm.slane %v1246, 0
      %v1248 = vmul.f32 %v1068, %v1247
      %v1249 = vmul.f32 %v1069, %v1247
      %v1250 = vmul.f32 %v1157, %v1247
      %v1251 = vmul.f32 %v1245, %v1247
      %v1252 = vadd.f32 %v1208, %v1248
      %v1253 = vadd.f32 %v1209, %v1249
      %v1254 = vadd.f32 %v1210, %v1250
      %v1255 = vadd.f32 %v1211, %v1251
      %v1256 = vld [vmem:[#allocation2 + $0x31] sm:$0xff]
      %v1257 = vld [vmem:[%s7 + $0x18] sm:$0x1]
      %v1258 = vperm.slane %v1257, 0
      %v1259 = vmul.f32 %v971, %v1258
      %v1260 = vmul.f32 %v1080, %v1258
      %v1261 = vmul.f32 %v1168, %v1258
      %v1262 = vmul.f32 %v1256, %v1258
      %v1263 = vadd.f32 %v1219, %v1259
      %v1264 = vadd.f32 %v1220, %v1260
      %v1265 = vadd.f32 %v1221, %v1261
      %v1266 = vadd.f32 %v1222, %v1262
      %v1267 = vld [vmem:[#allocation2 + $0x32] sm:$0xff]
      %v1268 = vld [vmem:[%s7 + $0x19] sm:$0x1]
      %v1269 = vperm.slane %v1268, 0
      %v1270 = vmul.f32 %v985, %v1269
      %v1271 = vmul.f32 %v1091, %v1269
      %v1272 = vmul.f32 %v1179, %v1269
      %v1273 = vmul.f32 %v1267, %v1269
      %v1274 = vadd.f32 %v1230, %v1270
      %v1275 = vadd.f32 %v1231, %v1271
      %v1276 = vadd.f32 %v1232, %v1272
      %v1277 = vadd.f32 %v1233, %v1273
      %v1278 = vld [vmem:[#allocation2 + $0x33] sm:$0xff]
      %v1279 = vld [vmem:[%s7 + $0x1a] sm:$0x1]
      %v1280 = vperm.slane %v1279, 0
      %v1281 = vmul.f32 %v999, %v1280
      %v1282 = vmul.f32 %v1102, %v1280
      %v1283 = vmul.f32 %v1190, %v1280
      %v1284 = vmul.f32 %v1278, %v1280
      %v1285 = vadd.f32 %v1241, %v1281
      %v1286 = vadd.f32 %v1242, %v1282
      %v1287 = vadd.f32 %v1243, %v1283
      %v1288 = vadd.f32 %v1244, %v1284
      %v1289 = vld [vmem:[#allocation2 + $0x34] sm:$0xff]
      %v1290 = vld [vmem:[%s7 + $0x1b] sm:$0x1]
      %v1291 = vperm.slane %v1290, 0
      %v1292 = vmul.f32 %v1013, %v1291
      %v1293 = vmul.f32 %v1113, %v1291
      %v1294 = vmul.f32 %v1201, %v1291
      %v1295 = vmul.f32 %v1289, %v1291
      %v1296 = vadd.f32 %v1252, %v1292
      %v1297 = vadd.f32 %v1253, %v1293
      %v1298 = vadd.f32 %v1254, %v1294
      %v1299 = vadd.f32 %v1255, %v1295
      %v1300 = vld [vmem:[#allocation2 + $0x35] sm:$0xff]
      %v1301 = vld [vmem:[%s7 + $0x1c] sm:$0x1]
      %v1302 = vperm.slane %v1301, 0
      %v1303 = vmul.f32 %v1027, %v1302
      %v1304 = vmul.f32 %v1124, %v1302
      %v1305 = vmul.f32 %v1212, %v1302
      %v1306 = vmul.f32 %v1300, %v1302
      %v1307 = vadd.f32 %v1263, %v1303
      %v1308 = vadd.f32 %v1264, %v1304
      %v1309 = vadd.f32 %v1265, %v1305
      %v1310 = vadd.f32 %v1266, %v1306
      %v1311 = vld [vmem:[#allocation2 + $0x36] sm:$0xff]
      %v1312 = vld [vmem:[%s7 + $0x1d] sm:$0x1]
      %v1313 = vperm.slane %v1312, 0
      %v1314 = vmul.f32 %v1041, %v1313
      %v1315 = vmul.f32 %v1135, %v1313
      %v1316 = vmul.f32 %v1223, %v1313
      %v1317 = vmul.f32 %v1311, %v1313
      %v1318 = vadd.f32 %v1274, %v1314
      %v1319 = vadd.f32 %v1275, %v1315
      %v1320 = vadd.f32 %v1276, %v1316
      %v1321 = vadd.f32 %v1277, %v1317
      %v1322 = vld [vmem:[#allocation2 + $0x37] sm:$0xff]
      %v1323 = vld [vmem:[%s7 + $0x1e] sm:$0x1]
      %v1324 = vperm.slane %v1323, 0
      %v1325 = vmul.f32 %v1055, %v1324
      %v1326 = vmul.f32 %v1146, %v1324
      %v1327 = vmul.f32 %v1234, %v1324
      %v1328 = vmul.f32 %v1322, %v1324
      %v1329 = vadd.f32 %v1285, %v1325
      %v1330 = vadd.f32 %v1286, %v1326
      %v1331 = vadd.f32 %v1287, %v1327
      %v1332 = vadd.f32 %v1288, %v1328
      %v1333 = vadd.f32 %v1307, %v1318
      %v1334 = vadd.f32 %v1308, %v1319
      %v1335 = vadd.f32 %v1309, %v1320
      %v1336 = vadd.f32 %v1310, %v1321
      %v1337 = vadd.f32 %v1329, %v1296
      %v1338 = vadd.f32 %v1330, %v1297
      %v1339 = vadd.f32 %v1331, %v1298
      %v1340 = vadd.f32 %v1332, %v1299
      %v1341 = vadd.f32 %v1333, %v1337
      %v1342 = vadd.f32 %v1334, %v1338
      %v1343 = vadd.f32 %v1335, %v1339
      %v1344 = vadd.f32 %v1336, %v1340
      %v1345 = vld [vmem:[%s8] sm:$0x1]
      %v1347 = vperm.slane %v1345, 0
      %v1349 = vadd.f32 %v1341, %v1347
      %v1350 = vadd.f32 %v1342, %v1347
      %v1351 = vadd.f32 %v1343, %v1347
      %v1352 = vadd.f32 %v1344, %v1347
      %v1353 = vxor.u32 %v1349, 2147483648
      %v1354 = vxor.u32 %v1350, 2147483648
      %v1355 = vxor.u32 %v1351, 2147483648
      %v1356 = vxor.u32 %v1352, 2147483648
      %v1357 = vmul.f32 %v1353, 1.442695
      %v1358 = vpow.pop %v1357
      %v1359 = vmul.f32 %v1354, 1.442695
      %v1360 = vpow.pop %v1359
      %v1361 = vmul.f32 %v1355, 1.442695
      %v1362 = vpow.pop %v1361
      %v1363 = vmul.f32 %v1356, 1.442695
      %v1364 = vpow.pop %v1363
      %v1365 = vadd.f32 %v1358, 1.0
      %v1366 = vadd.f32 %v1360, 1.0
      %v1367 = vadd.f32 %v1362, 1.0
      %v1368 = vadd.f32 %v1364, 1.0
      %v1369 = vrcp.pop %v1365
      %v1370 = vmul.f32 %v1365, %v1369
      %v1371 = vsub.f32 1.0, %v1370
      %v1372 = vmul.f32 %v1369, %v1371
      %v1373 = vadd.f32 %v1369, %v1372
      %vm1374 = vweird.f32 %v1365
      %vm1375 = vweird.f32 %v1369
      %vm1376 = vmor %vm1374, %vm1375
      %v1377 = vsel %vm1376, %v1369, %v1373
      %v1378 = vand.u32 2147483647, %v1365
      %vm1379 = vcmp.eq.f32.partialorder %v1378, 8.507059e+37
      %v1380 = vand.u32 %v1365, 2147483648
      %v1381 = vor.u32 1.1754944e-38, %v1380
      %v1382 = vsel %vm1379, %v1381, %v1377
      %v1383 = vmul.f32 1.0, %v1382
      %v1384 = vrcp.pop %v1366
      %v1385 = vmul.f32 %v1366, %v1384
      %v1386 = vsub.f32 1.0, %v1385
      %v1387 = vmul.f32 %v1384, %v1386
      %v1388 = vadd.f32 %v1384, %v1387
      %vm1389 = vweird.f32 %v1366
      %vm1390 = vweird.f32 %v1384
      %vm1391 = vmor %vm1389, %vm1390
      %v1392 = vsel %vm1391, %v1384, %v1388
      %v1393 = vand.u32 2147483647, %v1366
      %vm1394 = vcmp.eq.f32.partialorder %v1393, 8.507059e+37
      %v1395 = vand.u32 %v1366, 2147483648
      %v1396 = vor.u32 1.1754944e-38, %v1395
      %v1397 = vsel %vm1394, %v1396, %v1392
      %v1398 = vmul.f32 1.0, %v1397
      %v1399 = vrcp.pop %v1367
      %v1400 = vmul.f32 %v1367, %v1399
      %v1401 = vsub.f32 1.0, %v1400
      %v1402 = vmul.f32 %v1399, %v1401
      %v1403 = vadd.f32 %v1399, %v1402
      %vm1404 = vweird.f32 %v1367
      %vm1405 = vweird.f32 %v1399
      %vm1406 = vmor %vm1404, %vm1405
      %v1407 = vsel %vm1406, %v1399, %v1403
      %v1408 = vand.u32 2147483647, %v1367
      %vm1409 = vcmp.eq.f32.partialorder %v1408, 8.507059e+37
      %v1410 = vand.u32 %v1367, 2147483648
      %v1411 = vor.u32 1.1754944e-38, %v1410
      %v1412 = vsel %vm1409, %v1411, %v1407
      %v1413 = vmul.f32 1.0, %v1412
      %v1414 = vrcp.pop %v1368
      %v1415 = vmul.f32 %v1368, %v1414
      %v1416 = vsub.f32 1.0, %v1415
      %v1417 = vmul.f32 %v1414, %v1416
      %v1418 = vadd.f32 %v1414, %v1417
      %vm1419 = vweird.f32 %v1368
      %vm1420 = vweird.f32 %v1414
      %vm1421 = vmor %vm1419, %vm1420
      %v1422 = vsel %vm1421, %v1414, %v1418
      %v1423 = vand.u32 2147483647, %v1368
      %vm1424 = vcmp.eq.f32.partialorder %v1423, 8.507059e+37
      %v1425 = vand.u32 %v1368, 2147483648
      %v1426 = vor.u32 1.1754944e-38, %v1425
      %v1427 = vsel %vm1424, %v1426, %v1422
      %v1428 = vmul.f32 1.0, %v1427
      %v1429 = vmul.f32 %v1349, %v1383
      %v1430 = vmul.f32 %v1350, %v1398
      %v1431 = vmul.f32 %v1351, %v1413
      %v1432 = vmul.f32 %v1352, %v1428
      %v1433 = vld [vmem:[%s9] sm:$0xff]
      %v1434 = vld [vmem:[%s9 + $0x8] sm:$0xff]
      %v1435 = vld [vmem:[%s9 + $0x10] sm:$0xff]
      %v1436 = vld [vmem:[%s9 + $0x18] sm:$0xff]
      %v1437 = vld [vmem:[%s9 + $0x20] sm:$0xff]
      %v1438 = vld [vmem:[%s9 + $0x28] sm:$0xff]
      %v1439 = vld [vmem:[%s9 + $0x30] sm:$0xff]
      %v1440 = vld [vmem:[%s9 + $0x38] sm:$0xff]
      %v1441 = vld [vmem:[%s10] sm:$0x1]
      %v1443 = vperm.slane %v1441, 0
      %v1446 = vsel %vm752, %v1429, 0
      %v1449 = vsel %vm752, %v1430, 0
      %v1452 = vsel %vm752, %v1431, 0
      %v1455 = vsel %vm752, %v1432, 0
      %1457 = vmatpush.msra.mxu0 0.0
      %1458 = vmatpush.msra.mxu0 0.0
      %1459 = vmatpush.msra.mxu0 0.0
      %1460 = vmatpush.msra.mxu0 0.0
      %1461 = vmatpush.msra.mxu0 0.0
      %1462 = vmatpush.msra.mxu0 0.0
      %1463 = vmatpush.msra.mxu0 0.0
      %1464 = vmatpush.msra.mxu0 0.0
      %1465 = vmatpush.msra.mxu0 %v1440
      %1466 = vmatpush.msra.mxu0 %v1439
      %1467 = vmatpush.msra.mxu0 %v1438
      %1468 = vmatpush.msra.mxu0 %v1437
      %1469 = vmatpush.msra.mxu0 %v1436
      %1470 = vmatpush.msra.mxu0 %v1435
      %1471 = vmatpush.msra.mxu0 %v1434
      %1472 = vmatpush.msra.mxu0 %v1433
      %1473 = vmatmul.f32.gmra.mxu0 %v1446
      %v1474 = vpop.f32.mrf.mxu0
      %v1475 = vadd.f32 %v1443, %v1474
      %1476 = vmatmul.f32.gmra.mxu0 %v1449
      %v1477 = vpop.f32.mrf.mxu0
      %v1478 = vadd.f32 %v1443, %v1477
      %1479 = vmatmul.f32.gmra.mxu0 %v1452
      %v1480 = vpop.f32.mrf.mxu0
      %v1481 = vadd.f32 %v1443, %v1480
      %1482 = vmatmul.f32.gmra.mxu0 %v1455
      %v1483 = vpop.f32.mrf.mxu0
      %v1484 = vadd.f32 %v1443, %v1483
      %1485 = vdwg.mxu0
      %v1486 = vadd.f32 %v564, %v1475
      %v1487 = vadd.f32 %v565, %v1478
      %v1488 = vadd.f32 %v566, %v1481
      %v1489 = vadd.f32 %v567, %v1484
      %1490 = vst.msk [vmem:[%s552] sm:$0xff] %vm571, %v1486
      %1491 = vst.msk [vmem:[%s552 + $0x8] sm:$0xff] %vm571, %v1487
      %1492 = vst.msk [vmem:[%s552 + $0x10] sm:$0xff] %vm571, %v1488
      %1493 = vst.msk [vmem:[%s552 + $0x18] sm:$0xff] %vm571, %v1489
      %s1494 = smul.u32 4, %s27
      %p1495 = scmp.lt.s32.totalorder %s26, 1
      %s1496 = scalar_select %p1495, %s26, 1
      %p1497 = scmp.lt.s32.totalorder %s1494, 7
      %s1498 = scalar_select %p1497, %s1494, 7
      %s1499 = smul.addr %s1496, 8
      %s1500 = sadd.s32 %s1498, %s1499
      %s1501 = smul.addr %s1500, 8
      %s1502 = scalar_lea.vmem %s11, %s1501
      // Predicated region
      $region65: #{tpu_custom_call.1} parent=63 // pred_check
        %p1503 = pneg %p322
      $region66: #{tpu_custom_call.1} parent=63 // pred_check_branch
        %1505 = sbr.rel (%p1503) target = $region68
      $region67: #{tpu_custom_call.1} parent=63 // pred_region
        %s1506 = smul.u32 4, %s27
      $region68: #{tpu_custom_call.1} parent=63 // pred_fallthru
        _
    $region64: #{tpu_custom_call.1} parent=5 // pred_fallthru
      _
    %p1507 = scmp.le.s32.totalorder 2, %s17
    // Predicated region
    $region69: #{tpu_custom_call.1} parent=5 // pred_check
      %p1508 = pneg %p1507
    $region70: #{tpu_custom_call.1} parent=5 // pred_check_branch
      %1510 = sbr.rel (%p1508) target = $region72
    $region71: #{tpu_custom_call.1} parent=5 // pred_region
      %s1511 = ssub.s32 %s17, 2
      // Predicated region
      $region73: #{tpu_custom_call.1} parent=71 // pred_check
        %p1512 = pneg %p328
      $region74: #{tpu_custom_call.1} parent=71 // pred_check_branch
        %1514 = sbr.rel (%p1512) target = $region76
      $region75: #{tpu_custom_call.1} parent=71 // pred_region
        %s1515 = smul.u32 4, %s29
        %p1516 = scmp.lt.s32.totalorder %s28, 1
        %s1517 = scalar_select %p1516, %s28, 1
        %p1518 = scmp.lt.s32.totalorder %s1515, 7
        %s1519 = scalar_select %p1518, %s1515, 7
        %s1520 = smul.addr %s1517, 8
        %s1521 = sadd.s32 %s1519, %s1520
        %s1522 = smul.addr %s1521, 8
        %s1523 = scalar_lea.vmem %s11, %s1522
      $region76: #{tpu_custom_call.1} parent=71 // pred_fallthru
        _
    $region72: #{tpu_custom_call.1} parent=5 // pred_fallthru
      _
  $region6: #{tpu_custom_call.1} parent=0 // loop_footer
    %s21 = sadd.s32 1, %s17
  $region7: #{tpu_custom_call.1} parent=0 // loop_footer_branch
    %16 = sbr.rel target = $region3
  $region8: #{tpu_custom_call.1} parent=0 // loop_exit
    _

</llo_original>
